<compile_context>
chip_gen: v7x
topology: tpu7x:2x2x1
jax: 0.10.0
libtpu: 0.0.40
codegen_flags: <defaults>
</compile_context>

<pallas_src>
import functools

import jax
import jax.numpy as jnp
from jax import lax
from jax.experimental import pallas as pl
from jax.experimental.pallas import tpu as pltpu


def _lstm_recurrence_kernel(xg_ref, m_ref, whh_ref, hseq_ref, h_sc, c_sc, *, block_t):
    """One grid step = `block_t` sequential LSTM steps for one batch block.

    xg_ref:   (4, block_t, Bc, d_rnn) f32   precomputed x@W_ih^T + (b_ih+b_hh), gate-split
    m_ref:    (block_t, Bc, d_rnn)    f32   non-pad mask, pre-broadcast over d_rnn
    whh_ref:  (4, d_rnn, d_rnn)       bf16  recurrent weights per gate, (d_rnn_in, d_rnn_out)
    hseq_ref: (block_t, Bc, d_rnn)    f32   masked hidden states (0 at padded steps)
    h_sc/c_sc:(Bc, d_rnn)             f32   carried LSTM state
    """
    t_blk = pl.program_id(1)

    @pl.when(t_blk == 0)
    def _():
        h_sc[...] = jnp.zeros_like(h_sc)
        c_sc[...] = jnp.zeros_like(c_sc)

    # Hoist the grid-invariant recurrent weights out of the serial loop.
    w_i = whh_ref[0]
    w_f = whh_ref[1]
    w_g = whh_ref[2]
    w_o = whh_ref[3]

    def step(s, carry):
        h = h_sc[...]
        c = c_sc[...]
        hb = h.astype(jnp.bfloat16)          # bf16 into the MXU, f32 accumulate

        pre_i = xg_ref[0, s] + jnp.dot(hb, w_i, preferred_element_type=jnp.float32)
        pre_f = xg_ref[1, s] + jnp.dot(hb, w_f, preferred_element_type=jnp.float32)
        pre_g = xg_ref[2, s] + jnp.dot(hb, w_g, preferred_element_type=jnp.float32)
        pre_o = xg_ref[3, s] + jnp.dot(hb, w_o, preferred_element_type=jnp.float32)

        i_g = jax.nn.sigmoid(pre_i)
        f_g = jax.nn.sigmoid(pre_f)
        g_g = jnp.tanh(pre_g)
        o_g = jax.nn.sigmoid(pre_o)

        c_new = f_g * c + i_g * g_g
        h_new = o_g * jnp.tanh(c_new)

        valid = m_ref[s] > 0.0               # (Bc, d_rnn), already broadcast in wrapper
        c_sc[...] = jnp.where(valid, c_new, c)
        h_sc[...] = jnp.where(valid, h_new, h)
        # pad_packed_sequence semantics: padded positions emit 0 from the LSTM.
        hseq_ref[s] = jnp.where(valid, h_new, jnp.zeros_like(h_new))
        return carry

    lax.fori_loop(0, block_t, step, 0, unroll=True)


def rnn_layers_forward(data, non_pad_mask, params, *, block_t=None, block_b=None):
    """data: (B, T, d_model) f32, non_pad_mask: (B, T, 1) f32 -> (B, T, d_model) f32."""
    B, T, d_model = data.shape
    d_rnn = params["w_hh"].shape[1]

    tb = T if block_t is None else block_t
    bc = B if block_b is None else block_b
    assert T % tb == 0 and B % bc == 0
    assert bc == B or bc % 8 == 0

    # ---- hoisted input matmul: one big batched matmul, gate-split / time-major layout.
    w_ih4 = params["w_ih"].reshape(4, d_rnn, d_model)                 # gate order [i, f, g, o]
    bias4 = (params["b_ih"] + params["b_hh"]).reshape(4, d_rnn)
    xg = jnp.einsum("btm,grm->gtbr", data, w_ih4,
                    preferred_element_type=jnp.float32) + bias4[:, None, None, :]
    # xg: (4, T, B, d_rnn) f32

    # mask: time-major, pre-broadcast over d_rnn (no per-step broadcast in the serial loop)
    mask_t = jnp.broadcast_to(jnp.transpose(non_pad_mask, (1, 0, 2)),
                              (T, B, d_rnn)).astype(jnp.float32)

    # per-gate recurrent weights, transposed for h @ W, bf16 for the MXU
    whh4 = jnp.transpose(params["w_hh"].reshape(4, d_rnn, d_rnn),
                         (0, 2, 1)).astype(jnp.bfloat16)              # (4, d_rnn, d_rnn)

    kernel = functools.partial(_lstm_recurrence_kernel, block_t=tb)

    h_seq = pl.pallas_call(
        kernel,
        out_shape=jax.ShapeDtypeStruct((T, B, d_rnn), jnp.float32),
        grid_spec=pltpu.PrefetchScalarGridSpec(
            num_scalar_prefetch=0,
            grid=(B // bc, T // tb),
            in_specs=[
                pl.BlockSpec((4, tb, bc, d_rnn), lambda bb, tt: (0, tt, bb, 0)),
                pl.BlockSpec((tb, bc, d_rnn), lambda bb, tt: (tt, bb, 0)),
                pl.BlockSpec((4, d_rnn, d_rnn), lambda bb, tt: (0, 0, 0)),
            ],
            out_specs=pl.BlockSpec((tb, bc, d_rnn), lambda bb, tt: (tt, bb, 0)),
            scratch_shapes=[
                pltpu.VMEM((bc, d_rnn), jnp.float32),   # h state
                pltpu.VMEM((bc, d_rnn), jnp.float32),   # c state
            ],
        ),
        compiler_params=pltpu.CompilerParams(
            # batch axis parallel (uses both TCs on v7x), time axis is the recurrence
            dimension_semantics=("parallel", "arbitrary"),
            vmem_limit_bytes=64 * 1024 * 1024,
        ),
    )(xg, mask_t, whh4)                                               # (T, B, d_rnn)

    # ---- deferred output projection: one big batched matmul, back to batch-major.
    out = jnp.einsum("tbr,dr->btd", h_seq, params["w_proj"],
                     preferred_element_type=jnp.float32) + params["b_proj"]
    return out


def init_params(key, d_model, d_rnn):
    """Deterministic init matching PyTorch default U(-1/sqrt(d_rnn), 1/sqrt(d_rnn)) shapes."""
    k = jax.random.split(key, 6)
    s = 1.0 / jnp.sqrt(jnp.float32(d_rnn))
    u = lambda kk, shape: jax.random.uniform(kk, shape, jnp.float32, -s, s)
    return {
        "w_ih": u(k[0], (4 * d_rnn, d_model)),
        "w_hh": u(k[1], (4 * d_rnn, d_rnn)),
        "b_ih": u(k[2], (4 * d_rnn,)),
        "b_hh": u(k[3], (4 * d_rnn,)),
        "w_proj": u(k[4], (d_model, d_rnn)),
        "b_proj": u(k[5], (d_model,)),
    }


if __name__ == "__main__":
    B, T, d_model, d_rnn = 2, 8, 32, 32

    key = jax.random.PRNGKey(0)
    k_data, k_param = jax.random.split(key)

    data = jax.random.normal(k_data, (B, T, d_model), jnp.float32)

    # lengths = [8, 5] -> non_pad_mask (B, T, 1), padding at the end
    lengths = jnp.array([T, 5], dtype=jnp.int32)
    t_idx = jnp.arange(T)[None, :]                                    # (1, T)
    non_pad_mask = (t_idx < lengths[:, None]).astype(jnp.float32)[..., None]  # (B, T, 1)

    params = init_params(k_param, d_model, d_rnn)

    out = rnn_layers_forward(data, non_pad_mask, params)
    jax.block_until_ready(out)
    assert out.shape == (B, T, d_model)
    print("KERNEL_OK")
</pallas_src>

<mosaic_0001>
module attributes {stable_mosaic.version = 11 : i64} {
  func.func @_lstm_recurrence_kernel(%arg0: i32, %arg1: i32, %arg2: memref<4x8x2x32xf32, #tpu.memory_space<vmem>>, %arg3: memref<8x2x32xf32, #tpu.memory_space<vmem>>, %arg4: memref<4x32x32xbf16, #tpu.memory_space<vmem>>, %arg5: memref<8x2x32xf32, #tpu.memory_space<vmem>>, %arg6: memref<2x32xf32, #tpu.memory_space<vmem>>, %arg7: memref<2x32xf32, #tpu.memory_space<vmem>>) attributes {dimension_semantics = [#tpu.dimension_semantics<parallel>, #tpu.dimension_semantics<arbitrary>], iteration_bounds = array<i64: 1, 1>, scalar_prefetch = 0 : i64, scratch_operands = 2 : i64, tpu.core_type = #tpu.core_type<tc>, window_params = [{transform_indices = @transform_0, window_bounds = array<i64: 4, 8, 2, 32>}, {transform_indices = @transform_1, window_bounds = array<i64: 8, 2, 32>}, {pipeline_mode = #tpu.pipeline_mode<synchronous>, transform_indices = @transform_2, window_bounds = array<i64: 4, 32, 32>}, {transform_indices = @transform_3, window_bounds = array<i64: 8, 2, 32>}]} {
    %c0_i32 = arith.constant 0 : i32
    %0 = arith.cmpi eq, %arg1, %c0_i32 : i32
    %1 = arith.extui %0 : i1 to i32
    %c0_i32_0 = arith.constant 0 : i32
    %2 = arith.cmpi ne, %1, %c0_i32_0 : i32
    scf.if %2 {
      %cst_273 = arith.constant 0.000000e+00 : f32
      %483 = vector.broadcast %cst_273 : f32 to vector<2x32xf32>
      %c0_274 = arith.constant 0 : index
      %c0_275 = arith.constant 0 : index
      %484 = vector.load %arg6[%c0_274, %c0_275] : memref<2x32xf32, #tpu.memory_space<vmem>>, vector<2x32xf32>
      tpu.vector_store %arg6[%c0_274, %c0_275], %483 {strides = array<i32>} : memref<2x32xf32, #tpu.memory_space<vmem>>, vector<2x32xf32>,
      %cst_276 = arith.constant 0.000000e+00 : f32
      %485 = vector.broadcast %cst_276 : f32 to vector<2x32xf32>
      %c0_277 = arith.constant 0 : index
      %c0_278 = arith.constant 0 : index
      %486 = vector.load %arg7[%c0_277, %c0_278] : memref<2x32xf32, #tpu.memory_space<vmem>>, vector<2x32xf32>
      tpu.vector_store %arg7[%c0_277, %c0_278], %485 {strides = array<i32>} : memref<2x32xf32, #tpu.memory_space<vmem>>, vector<2x32xf32>,
    } else {
    }
    %c0 = arith.constant 0 : index
    %c0_1 = arith.constant 0 : index
    %c0_2 = arith.constant 0 : index
    %3 = vector.load %arg4[%c0, %c0_1, %c0_2] : memref<4x32x32xbf16, #tpu.memory_space<vmem>>, vector<1x32x32xbf16>
    %4 = vector.shape_cast %3 : vector<1x32x32xbf16> to vector<32x32xbf16>
    %c1 = arith.constant 1 : index
    %c0_3 = arith.constant 0 : index
    %c0_4 = arith.constant 0 : index
    %5 = vector.load %arg4[%c1, %c0_3, %c0_4] : memref<4x32x32xbf16, #tpu.memory_space<vmem>>, vector<1x32x32xbf16>
    %6 = vector.shape_cast %5 : vector<1x32x32xbf16> to vector<32x32xbf16>
    %c2 = arith.constant 2 : index
    %c0_5 = arith.constant 0 : index
    %c0_6 = arith.constant 0 : index
    %7 = vector.load %arg4[%c2, %c0_5, %c0_6] : memref<4x32x32xbf16, #tpu.memory_space<vmem>>, vector<1x32x32xbf16>
    %8 = vector.shape_cast %7 : vector<1x32x32xbf16> to vector<32x32xbf16>
    %c3 = arith.constant 3 : index
    %c0_7 = arith.constant 0 : index
    %c0_8 = arith.constant 0 : index
    %9 = vector.load %arg4[%c3, %c0_7, %c0_8] : memref<4x32x32xbf16, #tpu.memory_space<vmem>>, vector<1x32x32xbf16>
    %10 = vector.shape_cast %9 : vector<1x32x32xbf16> to vector<32x32xbf16>
    %c0_i32_9 = arith.constant 0 : i32
    %c0_10 = arith.constant 0 : index
    %c0_11 = arith.constant 0 : index
    %11 = vector.load %arg6[%c0_10, %c0_11] : memref<2x32xf32, #tpu.memory_space<vmem>>, vector<2x32xf32>
    %c0_12 = arith.constant 0 : index
    %c0_13 = arith.constant 0 : index
    %12 = vector.load %arg7[%c0_12, %c0_13] : memref<2x32xf32, #tpu.memory_space<vmem>>, vector<2x32xf32>
    %13 = arith.truncf %11 : vector<2x32xf32> to vector<2x32xbf16>
    %c0_14 = arith.constant 0 : index
    %14 = arith.index_cast %c0_i32_9 : i32 to index
    %c0_15 = arith.constant 0 : index
    %c0_16 = arith.constant 0 : index
    %15 = vector.load %arg2[%c0_14, %14, %c0_15, %c0_16] : memref<4x8x2x32xf32, #tpu.memory_space<vmem>>, vector<1x1x2x32xf32>
    %16 = vector.shape_cast %15 : vector<1x1x2x32xf32> to vector<2x32xf32>
    %cst = arith.constant dense<0.000000e+00> : vector<2x32xf32>
    %17 = tpu.matmul %13, %4, %cst {dimension_numbers = #tpu.dot_dimension_numbers<[1], [0], [0], [1], [0, 0, 1, 1], [], []>} : vector<2x32xbf16>, vector<32x32xbf16>, vector<2x32xf32> -> vector<2x32xf32>
    %18 = arith.addf %16, %17 : vector<2x32xf32>
    %c1_17 = arith.constant 1 : index
    %19 = arith.index_cast %c0_i32_9 : i32 to index
    %c0_18 = arith.constant 0 : index
    %c0_19 = arith.constant 0 : index
    %20 = vector.load %arg2[%c1_17, %19, %c0_18, %c0_19] : memref<4x8x2x32xf32, #tpu.memory_space<vmem>>, vector<1x1x2x32xf32>
    %21 = vector.shape_cast %20 : vector<1x1x2x32xf32> to vector<2x32xf32>
    %cst_20 = arith.constant dense<0.000000e+00> : vector<2x32xf32>
    %22 = tpu.matmul %13, %6, %cst_20 {dimension_numbers = #tpu.dot_dimension_numbers<[1], [0], [0], [1], [0, 0, 1, 1], [], []>} : vector<2x32xbf16>, vector<32x32xbf16>, vector<2x32xf32> -> vector<2x32xf32>
    %23 = arith.addf %21, %22 : vector<2x32xf32>
    %c2_21 = arith.constant 2 : index
    %24 = arith.index_cast %c0_i32_9 : i32 to index
    %c0_22 = arith.constant 0 : index
    %c0_23 = arith.constant 0 : index
    %25 = vector.load %arg2[%c2_21, %24, %c0_22, %c0_23] : memref<4x8x2x32xf32, #tpu.memory_space<vmem>>, vector<1x1x2x32xf32>
    %26 = vector.shape_cast %25 : vector<1x1x2x32xf32> to vector<2x32xf32>
    %cst_24 = arith.constant dense<0.000000e+00> : vector<2x32xf32>
    %27 = tpu.matmul %13, %8, %cst_24 {dimension_numbers = #tpu.dot_dimension_numbers<[1], [0], [0], [1], [0, 0, 1, 1], [], []>} : vector<2x32xbf16>, vector<32x32xbf16>, vector<2x32xf32> -> vector<2x32xf32>
    %28 = arith.addf %26, %27 : vector<2x32xf32>
    %c3_25 = arith.constant 3 : index
    %29 = arith.index_cast %c0_i32_9 : i32 to index
    %c0_26 = arith.constant 0 : index
    %c0_27 = arith.constant 0 : index
    %30 = vector.load %arg2[%c3_25, %29, %c0_26, %c0_27] : memref<4x8x2x32xf32, #tpu.memory_space<vmem>>, vector<1x1x2x32xf32>
    %31 = vector.shape_cast %30 : vector<1x1x2x32xf32> to vector<2x32xf32>
    %cst_28 = arith.constant dense<0.000000e+00> : vector<2x32xf32>
    %32 = tpu.matmul %13, %10, %cst_28 {dimension_numbers = #tpu.dot_dimension_numbers<[1], [0], [0], [1], [0, 0, 1, 1], [], []>} : vector<2x32xbf16>, vector<32x32xbf16>, vector<2x32xf32> -> vector<2x32xf32>
    %33 = arith.addf %31, %32 : vector<2x32xf32>
    %34 = arith.negf %18 : vector<2x32xf32>
    %35 = math.exp %34 : vector<2x32xf32>
    %cst_29 = arith.constant 1.000000e+00 : f32
    %36 = vector.broadcast %cst_29 : f32 to vector<2x32xf32>
    %37 = arith.addf %36, %35 : vector<2x32xf32>
    %38 = arith.divf %36, %37 : vector<2x32xf32>
    %39 = arith.negf %23 : vector<2x32xf32>
    %40 = math.exp %39 : vector<2x32xf32>
    %cst_30 = arith.constant 1.000000e+00 : f32
    %41 = vector.broadcast %cst_30 : f32 to vector<2x32xf32>
    %42 = arith.addf %41, %40 : vector<2x32xf32>
    %43 = arith.divf %41, %42 : vector<2x32xf32>
    %44 = math.tanh %28 : vector<2x32xf32>
    %45 = arith.negf %33 : vector<2x32xf32>
    %46 = math.exp %45 : vector<2x32xf32>
    %cst_31 = arith.constant 1.000000e+00 : f32
    %47 = vector.broadcast %cst_31 : f32 to vector<2x32xf32>
    %48 = arith.addf %47, %46 : vector<2x32xf32>
    %49 = arith.divf %47, %48 : vector<2x32xf32>
    %50 = arith.mulf %43, %12 : vector<2x32xf32>
    %51 = arith.mulf %38, %44 : vector<2x32xf32>
    %52 = arith.addf %50, %51 : vector<2x32xf32>
    %53 = math.tanh %52 : vector<2x32xf32>
    %54 = arith.mulf %49, %53 : vector<2x32xf32>
    %55 = arith.index_cast %c0_i32_9 : i32 to index
    %c0_32 = arith.constant 0 : index
    %c0_33 = arith.constant 0 : index
    %56 = vector.load %arg3[%55, %c0_32, %c0_33] : memref<8x2x32xf32, #tpu.memory_space<vmem>>, vector<1x2x32xf32>
    %57 = vector.shape_cast %56 : vector<1x2x32xf32> to vector<2x32xf32>
    %cst_34 = arith.constant 0.000000e+00 : f32
    %58 = vector.broadcast %cst_34 : f32 to vector<2x32xf32>
    %59 = arith.cmpf ogt, %57, %58 : vector<2x32xf32>
    %60 = arith.select %59, %52, %12 : vector<2x32xi1>, vector<2x32xf32>
    %c0_35 = arith.constant 0 : index
    %c0_36 = arith.constant 0 : index
    %61 = vector.load %arg7[%c0_35, %c0_36] : memref<2x32xf32, #tpu.memory_space<vmem>>, vector<2x32xf32>
    tpu.vector_store %arg7[%c0_35, %c0_36], %60 {strides = array<i32>} : memref<2x32xf32, #tpu.memory_space<vmem>>, vector<2x32xf32>,
    %62 = arith.select %59, %54, %11 : vector<2x32xi1>, vector<2x32xf32>
    %c0_37 = arith.constant 0 : index
    %c0_38 = arith.constant 0 : index
    %63 = vector.load %arg6[%c0_37, %c0_38] : memref<2x32xf32, #tpu.memory_space<vmem>>, vector<2x32xf32>
    tpu.vector_store %arg6[%c0_37, %c0_38], %62 {strides = array<i32>} : memref<2x32xf32, #tpu.memory_space<vmem>>, vector<2x32xf32>,
    %cst_39 = arith.constant 0.000000e+00 : f32
    %64 = vector.broadcast %cst_39 : f32 to vector<2x32xf32>
    %65 = arith.select %59, %54, %64 : vector<2x32xi1>, vector<2x32xf32>
    %66 = arith.index_cast %c0_i32_9 : i32 to index
    %c0_40 = arith.constant 0 : index
    %c0_41 = arith.constant 0 : index
    %67 = vector.load %arg5[%66, %c0_40, %c0_41] : memref<8x2x32xf32, #tpu.memory_space<vmem>>, vector<1x2x32xf32>
    %68 = vector.shape_cast %67 : vector<1x2x32xf32> to vector<2x32xf32>
    %69 = vector.shape_cast %65 : vector<2x32xf32> to vector<1x2x32xf32>
    tpu.vector_store %arg5[%66, %c0_40, %c0_41], %69 {strides = array<i32>} : memref<8x2x32xf32, #tpu.memory_space<vmem>>, vector<1x2x32xf32>,
    %c1_i32 = arith.constant 1 : i32
    %c0_42 = arith.constant 0 : index
    %c0_43 = arith.constant 0 : index
    %70 = vector.load %arg6[%c0_42, %c0_43] : memref<2x32xf32, #tpu.memory_space<vmem>>, vector<2x32xf32>
    %c0_44 = arith.constant 0 : index
    %c0_45 = arith.constant 0 : index
    %71 = vector.load %arg7[%c0_44, %c0_45] : memref<2x32xf32, #tpu.memory_space<vmem>>, vector<2x32xf32>
    %72 = arith.truncf %70 : vector<2x32xf32> to vector<2x32xbf16>
    %c0_46 = arith.constant 0 : index
    %73 = arith.index_cast %c1_i32 : i32 to index
    %c0_47 = arith.constant 0 : index
    %c0_48 = arith.constant 0 : index
    %74 = vector.load %arg2[%c0_46, %73, %c0_47, %c0_48] : memref<4x8x2x32xf32, #tpu.memory_space<vmem>>, vector<1x1x2x32xf32>
    %75 = vector.shape_cast %74 : vector<1x1x2x32xf32> to vector<2x32xf32>
    %cst_49 = arith.constant dense<0.000000e+00> : vector<2x32xf32>
    %76 = tpu.matmul %72, %4, %cst_49 {dimension_numbers = #tpu.dot_dimension_numbers<[1], [0], [0], [1], [0, 0, 1, 1], [], []>} : vector<2x32xbf16>, vector<32x32xbf16>, vector<2x32xf32> -> vector<2x32xf32>
    %77 = arith.addf %75, %76 : vector<2x32xf32>
    %c1_50 = arith.constant 1 : index
    %78 = arith.index_cast %c1_i32 : i32 to index
    %c0_51 = arith.constant 0 : index
    %c0_52 = arith.constant 0 : index
    %79 = vector.load %arg2[%c1_50, %78, %c0_51, %c0_52] : memref<4x8x2x32xf32, #tpu.memory_space<vmem>>, vector<1x1x2x32xf32>
    %80 = vector.shape_cast %79 : vector<1x1x2x32xf32> to vector<2x32xf32>
    %cst_53 = arith.constant dense<0.000000e+00> : vector<2x32xf32>
    %81 = tpu.matmul %72, %6, %cst_53 {dimension_numbers = #tpu.dot_dimension_numbers<[1], [0], [0], [1], [0, 0, 1, 1], [], []>} : vector<2x32xbf16>, vector<32x32xbf16>, vector<2x32xf32> -> vector<2x32xf32>
    %82 = arith.addf %80, %81 : vector<2x32xf32>
    %c2_54 = arith.constant 2 : index
    %83 = arith.index_cast %c1_i32 : i32 to index
    %c0_55 = arith.constant 0 : index
    %c0_56 = arith.constant 0 : index
    %84 = vector.load %arg2[%c2_54, %83, %c0_55, %c0_56] : memref<4x8x2x32xf32, #tpu.memory_space<vmem>>, vector<1x1x2x32xf32>
    %85 = vector.shape_cast %84 : vector<1x1x2x32xf32> to vector<2x32xf32>
    %cst_57 = arith.constant dense<0.000000e+00> : vector<2x32xf32>
    %86 = tpu.matmul %72, %8, %cst_57 {dimension_numbers = #tpu.dot_dimension_numbers<[1], [0], [0], [1], [0, 0, 1, 1], [], []>} : vector<2x32xbf16>, vector<32x32xbf16>, vector<2x32xf32> -> vector<2x32xf32>
    %87 = arith.addf %85, %86 : vector<2x32xf32>
    %c3_58 = arith.constant 3 : index
    %88 = arith.index_cast %c1_i32 : i32 to index
    %c0_59 = arith.constant 0 : index
    %c0_60 = arith.constant 0 : index
    %89 = vector.load %arg2[%c3_58, %88, %c0_59, %c0_60] : memref<4x8x2x32xf32, #tpu.memory_space<vmem>>, vector<1x1x2x32xf32>
    %90 = vector.shape_cast %89 : vector<1x1x2x32xf32> to vector<2x32xf32>
    %cst_61 = arith.constant dense<0.000000e+00> : vector<2x32xf32>
    %91 = tpu.matmul %72, %10, %cst_61 {dimension_numbers = #tpu.dot_dimension_numbers<[1], [0], [0], [1], [0, 0, 1, 1], [], []>} : vector<2x32xbf16>, vector<32x32xbf16>, vector<2x32xf32> -> vector<2x32xf32>
    %92 = arith.addf %90, %91 : vector<2x32xf32>
    %93 = arith.negf %77 : vector<2x32xf32>
    %94 = math.exp %93 : vector<2x32xf32>
    %cst_62 = arith.constant 1.000000e+00 : f32
    %95 = vector.broadcast %cst_62 : f32 to vector<2x32xf32>
    %96 = arith.addf %95, %94 : vector<2x32xf32>
    %97 = arith.divf %95, %96 : vector<2x32xf32>
    %98 = arith.negf %82 : vector<2x32xf32>
    %99 = math.exp %98 : vector<2x32xf32>
    %cst_63 = arith.constant 1.000000e+00 : f32
    %100 = vector.broadcast %cst_63 : f32 to vector<2x32xf32>
    %101 = arith.addf %100, %99 : vector<2x32xf32>
    %102 = arith.divf %100, %101 : vector<2x32xf32>
    %103 = math.tanh %87 : vector<2x32xf32>
    %104 = arith.negf %92 : vector<2x32xf32>
    %105 = math.exp %104 : vector<2x32xf32>
    %cst_64 = arith.constant 1.000000e+00 : f32
    %106 = vector.broadcast %cst_64 : f32 to vector<2x32xf32>
    %107 = arith.addf %106, %105 : vector<2x32xf32>
    %108 = arith.divf %106, %107 : vector<2x32xf32>
    %109 = arith.mulf %102, %71 : vector<2x32xf32>
    %110 = arith.mulf %97, %103 : vector<2x32xf32>
    %111 = arith.addf %109, %110 : vector<2x32xf32>
    %112 = math.tanh %111 : vector<2x32xf32>
    %113 = arith.mulf %108, %112 : vector<2x32xf32>
    %114 = arith.index_cast %c1_i32 : i32 to index
    %c0_65 = arith.constant 0 : index
    %c0_66 = arith.constant 0 : index
    %115 = vector.load %arg3[%114, %c0_65, %c0_66] : memref<8x2x32xf32, #tpu.memory_space<vmem>>, vector<1x2x32xf32>
    %116 = vector.shape_cast %115 : vector<1x2x32xf32> to vector<2x32xf32>
    %cst_67 = arith.constant 0.000000e+00 : f32
    %117 = vector.broadcast %cst_67 : f32 to vector<2x32xf32>
    %118 = arith.cmpf ogt, %116, %117 : vector<2x32xf32>
    %119 = arith.select %118, %111, %71 : vector<2x32xi1>, vector<2x32xf32>
    %c0_68 = arith.constant 0 : index
    %c0_69 = arith.constant 0 : index
    %120 = vector.load %arg7[%c0_68, %c0_69] : memref<2x32xf32, #tpu.memory_space<vmem>>, vector<2x32xf32>
    tpu.vector_store %arg7[%c0_68, %c0_69], %119 {strides = array<i32>} : memref<2x32xf32, #tpu.memory_space<vmem>>, vector<2x32xf32>,
    %121 = arith.select %118, %113, %70 : vector<2x32xi1>, vector<2x32xf32>
    %c0_70 = arith.constant 0 : index
    %c0_71 = arith.constant 0 : index
    %122 = vector.load %arg6[%c0_70, %c0_71] : memref<2x32xf32, #tpu.memory_space<vmem>>, vector<2x32xf32>
    tpu.vector_store %arg6[%c0_70, %c0_71], %121 {strides = array<i32>} : memref<2x32xf32, #tpu.memory_space<vmem>>, vector<2x32xf32>,
    %cst_72 = arith.constant 0.000000e+00 : f32
    %123 = vector.broadcast %cst_72 : f32 to vector<2x32xf32>
    %124 = arith.select %118, %113, %123 : vector<2x32xi1>, vector<2x32xf32>
    %125 = arith.index_cast %c1_i32 : i32 to index
    %c0_73 = arith.constant 0 : index
    %c0_74 = arith.constant 0 : index
    %126 = vector.load %arg5[%125, %c0_73, %c0_74] : memref<8x2x32xf32, #tpu.memory_space<vmem>>, vector<1x2x32xf32>
    %127 = vector.shape_cast %126 : vector<1x2x32xf32> to vector<2x32xf32>
    %128 = vector.shape_cast %124 : vector<2x32xf32> to vector<1x2x32xf32>
    tpu.vector_store %arg5[%125, %c0_73, %c0_74], %128 {strides = array<i32>} : memref<8x2x32xf32, #tpu.memory_space<vmem>>, vector<1x2x32xf32>,
    %c2_i32 = arith.constant 2 : i32
    %c0_75 = arith.constant 0 : index
    %c0_76 = arith.constant 0 : index
    %129 = vector.load %arg6[%c0_75, %c0_76] : memref<2x32xf32, #tpu.memory_space<vmem>>, vector<2x32xf32>
    %c0_77 = arith.constant 0 : index
    %c0_78 = arith.constant 0 : index
    %130 = vector.load %arg7[%c0_77, %c0_78] : memref<2x32xf32, #tpu.memory_space<vmem>>, vector<2x32xf32>
    %131 = arith.truncf %129 : vector<2x32xf32> to vector<2x32xbf16>
    %c0_79 = arith.constant 0 : index
    %132 = arith.index_cast %c2_i32 : i32 to index
    %c0_80 = arith.constant 0 : index
    %c0_81 = arith.constant 0 : index
    %133 = vector.load %arg2[%c0_79, %132, %c0_80, %c0_81] : memref<4x8x2x32xf32, #tpu.memory_space<vmem>>, vector<1x1x2x32xf32>
    %134 = vector.shape_cast %133 : vector<1x1x2x32xf32> to vector<2x32xf32>
    %cst_82 = arith.constant dense<0.000000e+00> : vector<2x32xf32>
    %135 = tpu.matmul %131, %4, %cst_82 {dimension_numbers = #tpu.dot_dimension_numbers<[1], [0], [0], [1], [0, 0, 1, 1], [], []>} : vector<2x32xbf16>, vector<32x32xbf16>, vector<2x32xf32> -> vector<2x32xf32>
    %136 = arith.addf %134, %135 : vector<2x32xf32>
    %c1_83 = arith.constant 1 : index
    %137 = arith.index_cast %c2_i32 : i32 to index
    %c0_84 = arith.constant 0 : index
    %c0_85 = arith.constant 0 : index
    %138 = vector.load %arg2[%c1_83, %137, %c0_84, %c0_85] : memref<4x8x2x32xf32, #tpu.memory_space<vmem>>, vector<1x1x2x32xf32>
    %139 = vector.shape_cast %138 : vector<1x1x2x32xf32> to vector<2x32xf32>
    %cst_86 = arith.constant dense<0.000000e+00> : vector<2x32xf32>
    %140 = tpu.matmul %131, %6, %cst_86 {dimension_numbers = #tpu.dot_dimension_numbers<[1], [0], [0], [1], [0, 0, 1, 1], [], []>} : vector<2x32xbf16>, vector<32x32xbf16>, vector<2x32xf32> -> vector<2x32xf32>
    %141 = arith.addf %139, %140 : vector<2x32xf32>
    %c2_87 = arith.constant 2 : index
    %142 = arith.index_cast %c2_i32 : i32 to index
    %c0_88 = arith.constant 0 : index
    %c0_89 = arith.constant 0 : index
    %143 = vector.load %arg2[%c2_87, %142, %c0_88, %c0_89] : memref<4x8x2x32xf32, #tpu.memory_space<vmem>>, vector<1x1x2x32xf32>
    %144 = vector.shape_cast %143 : vector<1x1x2x32xf32> to vector<2x32xf32>
    %cst_90 = arith.constant dense<0.000000e+00> : vector<2x32xf32>
    %145 = tpu.matmul %131, %8, %cst_90 {dimension_numbers = #tpu.dot_dimension_numbers<[1], [0], [0], [1], [0, 0, 1, 1], [], []>} : vector<2x32xbf16>, vector<32x32xbf16>, vector<2x32xf32> -> vector<2x32xf32>
    %146 = arith.addf %144, %145 : vector<2x32xf32>
    %c3_91 = arith.constant 3 : index
    %147 = arith.index_cast %c2_i32 : i32 to index
    %c0_92 = arith.constant 0 : index
    %c0_93 = arith.constant 0 : index
    %148 = vector.load %arg2[%c3_91, %147, %c0_92, %c0_93] : memref<4x8x2x32xf32, #tpu.memory_space<vmem>>, vector<1x1x2x32xf32>
    %149 = vector.shape_cast %148 : vector<1x1x2x32xf32> to vector<2x32xf32>
    %cst_94 = arith.constant dense<0.000000e+00> : vector<2x32xf32>
    %150 = tpu.matmul %131, %10, %cst_94 {dimension_numbers = #tpu.dot_dimension_numbers<[1], [0], [0], [1], [0, 0, 1, 1], [], []>} : vector<2x32xbf16>, vector<32x32xbf16>, vector<2x32xf32> -> vector<2x32xf32>
    %151 = arith.addf %149, %150 : vector<2x32xf32>
    %152 = arith.negf %136 : vector<2x32xf32>
    %153 = math.exp %152 : vector<2x32xf32>
    %cst_95 = arith.constant 1.000000e+00 : f32
    %154 = vector.broadcast %cst_95 : f32 to vector<2x32xf32>
    %155 = arith.addf %154, %153 : vector<2x32xf32>
    %156 = arith.divf %154, %155 : vector<2x32xf32>
    %157 = arith.negf %141 : vector<2x32xf32>
    %158 = math.exp %157 : vector<2x32xf32>
    %cst_96 = arith.constant 1.000000e+00 : f32
    %159 = vector.broadcast %cst_96 : f32 to vector<2x32xf32>
    %160 = arith.addf %159, %158 : vector<2x32xf32>
    %161 = arith.divf %159, %160 : vector<2x32xf32>
    %162 = math.tanh %146 : vector<2x32xf32>
    %163 = arith.negf %151 : vector<2x32xf32>
    %164 = math.exp %163 : vector<2x32xf32>
    %cst_97 = arith.constant 1.000000e+00 : f32
    %165 = vector.broadcast %cst_97 : f32 to vector<2x32xf32>
    %166 = arith.addf %165, %164 : vector<2x32xf32>
    %167 = arith.divf %165, %166 : vector<2x32xf32>
    %168 = arith.mulf %161, %130 : vector<2x32xf32>
    %169 = arith.mulf %156, %162 : vector<2x32xf32>
    %170 = arith.addf %168, %169 : vector<2x32xf32>
    %171 = math.tanh %170 : vector<2x32xf32>
    %172 = arith.mulf %167, %171 : vector<2x32xf32>
    %173 = arith.index_cast %c2_i32 : i32 to index
    %c0_98 = arith.constant 0 : index
    %c0_99 = arith.constant 0 : index
    %174 = vector.load %arg3[%173, %c0_98, %c0_99] : memref<8x2x32xf32, #tpu.memory_space<vmem>>, vector<1x2x32xf32>
    %175 = vector.shape_cast %174 : vector<1x2x32xf32> to vector<2x32xf32>
    %cst_100 = arith.constant 0.000000e+00 : f32
    %176 = vector.broadcast %cst_100 : f32 to vector<2x32xf32>
    %177 = arith.cmpf ogt, %175, %176 : vector<2x32xf32>
    %178 = arith.select %177, %170, %130 : vector<2x32xi1>, vector<2x32xf32>
    %c0_101 = arith.constant 0 : index
    %c0_102 = arith.constant 0 : index
    %179 = vector.load %arg7[%c0_101, %c0_102] : memref<2x32xf32, #tpu.memory_space<vmem>>, vector<2x32xf32>
    tpu.vector_store %arg7[%c0_101, %c0_102], %178 {strides = array<i32>} : memref<2x32xf32, #tpu.memory_space<vmem>>, vector<2x32xf32>,
    %180 = arith.select %177, %172, %129 : vector<2x32xi1>, vector<2x32xf32>
    %c0_103 = arith.constant 0 : index
    %c0_104 = arith.constant 0 : index
    %181 = vector.load %arg6[%c0_103, %c0_104] : memref<2x32xf32, #tpu.memory_space<vmem>>, vector<2x32xf32>
    tpu.vector_store %arg6[%c0_103, %c0_104], %180 {strides = array<i32>} : memref<2x32xf32, #tpu.memory_space<vmem>>, vector<2x32xf32>,
    %cst_105 = arith.constant 0.000000e+00 : f32
    %182 = vector.broadcast %cst_105 : f32 to vector<2x32xf32>
    %183 = arith.select %177, %172, %182 : vector<2x32xi1>, vector<2x32xf32>
    %184 = arith.index_cast %c2_i32 : i32 to index
    %c0_106 = arith.constant 0 : index
    %c0_107 = arith.constant 0 : index
    %185 = vector.load %arg5[%184, %c0_106, %c0_107] : memref<8x2x32xf32, #tpu.memory_space<vmem>>, vector<1x2x32xf32>
    %186 = vector.shape_cast %185 : vector<1x2x32xf32> to vector<2x32xf32>
    %187 = vector.shape_cast %183 : vector<2x32xf32> to vector<1x2x32xf32>
    tpu.vector_store %arg5[%184, %c0_106, %c0_107], %187 {strides = array<i32>} : memref<8x2x32xf32, #tpu.memory_space<vmem>>, vector<1x2x32xf32>,
    %c3_i32 = arith.constant 3 : i32
    %c0_108 = arith.constant 0 : index
    %c0_109 = arith.constant 0 : index
    %188 = vector.load %arg6[%c0_108, %c0_109] : memref<2x32xf32, #tpu.memory_space<vmem>>, vector<2x32xf32>
    %c0_110 = arith.constant 0 : index
    %c0_111 = arith.constant 0 : index
    %189 = vector.load %arg7[%c0_110, %c0_111] : memref<2x32xf32, #tpu.memory_space<vmem>>, vector<2x32xf32>
    %190 = arith.truncf %188 : vector<2x32xf32> to vector<2x32xbf16>
    %c0_112 = arith.constant 0 : index
    %191 = arith.index_cast %c3_i32 : i32 to index
    %c0_113 = arith.constant 0 : index
    %c0_114 = arith.constant 0 : index
    %192 = vector.load %arg2[%c0_112, %191, %c0_113, %c0_114] : memref<4x8x2x32xf32, #tpu.memory_space<vmem>>, vector<1x1x2x32xf32>
    %193 = vector.shape_cast %192 : vector<1x1x2x32xf32> to vector<2x32xf32>
    %cst_115 = arith.constant dense<0.000000e+00> : vector<2x32xf32>
    %194 = tpu.matmul %190, %4, %cst_115 {dimension_numbers = #tpu.dot_dimension_numbers<[1], [0], [0], [1], [0, 0, 1, 1], [], []>} : vector<2x32xbf16>, vector<32x32xbf16>, vector<2x32xf32> -> vector<2x32xf32>
    %195 = arith.addf %193, %194 : vector<2x32xf32>
    %c1_116 = arith.constant 1 : index
    %196 = arith.index_cast %c3_i32 : i32 to index
    %c0_117 = arith.constant 0 : index
    %c0_118 = arith.constant 0 : index
    %197 = vector.load %arg2[%c1_116, %196, %c0_117, %c0_118] : memref<4x8x2x32xf32, #tpu.memory_space<vmem>>, vector<1x1x2x32xf32>
    %198 = vector.shape_cast %197 : vector<1x1x2x32xf32> to vector<2x32xf32>
    %cst_119 = arith.constant dense<0.000000e+00> : vector<2x32xf32>
    %199 = tpu.matmul %190, %6, %cst_119 {dimension_numbers = #tpu.dot_dimension_numbers<[1], [0], [0], [1], [0, 0, 1, 1], [], []>} : vector<2x32xbf16>, vector<32x32xbf16>, vector<2x32xf32> -> vector<2x32xf32>
    %200 = arith.addf %198, %199 : vector<2x32xf32>
    %c2_120 = arith.constant 2 : index
    %201 = arith.index_cast %c3_i32 : i32 to index
    %c0_121 = arith.constant 0 : index
    %c0_122 = arith.constant 0 : index
    %202 = vector.load %arg2[%c2_120, %201, %c0_121, %c0_122] : memref<4x8x2x32xf32, #tpu.memory_space<vmem>>, vector<1x1x2x32xf32>
    %203 = vector.shape_cast %202 : vector<1x1x2x32xf32> to vector<2x32xf32>
    %cst_123 = arith.constant dense<0.000000e+00> : vector<2x32xf32>
    %204 = tpu.matmul %190, %8, %cst_123 {dimension_numbers = #tpu.dot_dimension_numbers<[1], [0], [0], [1], [0, 0, 1, 1], [], []>} : vector<2x32xbf16>, vector<32x32xbf16>, vector<2x32xf32> -> vector<2x32xf32>
    %205 = arith.addf %203, %204 : vector<2x32xf32>
    %c3_124 = arith.constant 3 : index
    %206 = arith.index_cast %c3_i32 : i32 to index
    %c0_125 = arith.constant 0 : index
    %c0_126 = arith.constant 0 : index
    %207 = vector.load %arg2[%c3_124, %206, %c0_125, %c0_126] : memref<4x8x2x32xf32, #tpu.memory_space<vmem>>, vector<1x1x2x32xf32>
    %208 = vector.shape_cast %207 : vector<1x1x2x32xf32> to vector<2x32xf32>
    %cst_127 = arith.constant dense<0.000000e+00> : vector<2x32xf32>
    %209 = tpu.matmul %190, %10, %cst_127 {dimension_numbers = #tpu.dot_dimension_numbers<[1], [0], [0], [1], [0, 0, 1, 1], [], []>} : vector<2x32xbf16>, vector<32x32xbf16>, vector<2x32xf32> -> vector<2x32xf32>
    %210 = arith.addf %208, %209 : vector<2x32xf32>
    %211 = arith.negf %195 : vector<2x32xf32>
    %212 = math.exp %211 : vector<2x32xf32>
    %cst_128 = arith.constant 1.000000e+00 : f32
    %213 = vector.broadcast %cst_128 : f32 to vector<2x32xf32>
    %214 = arith.addf %213, %212 : vector<2x32xf32>
    %215 = arith.divf %213, %214 : vector<2x32xf32>
    %216 = arith.negf %200 : vector<2x32xf32>
    %217 = math.exp %216 : vector<2x32xf32>
    %cst_129 = arith.constant 1.000000e+00 : f32
    %218 = vector.broadcast %cst_129 : f32 to vector<2x32xf32>
    %219 = arith.addf %218, %217 : vector<2x32xf32>
    %220 = arith.divf %218, %219 : vector<2x32xf32>
    %221 = math.tanh %205 : vector<2x32xf32>
    %222 = arith.negf %210 : vector<2x32xf32>
    %223 = math.exp %222 : vector<2x32xf32>
    %cst_130 = arith.constant 1.000000e+00 : f32
    %224 = vector.broadcast %cst_130 : f32 to vector<2x32xf32>
    %225 = arith.addf %224, %223 : vector<2x32xf32>
    %226 = arith.divf %224, %225 : vector<2x32xf32>
    %227 = arith.mulf %220, %189 : vector<2x32xf32>
    %228 = arith.mulf %215, %221 : vector<2x32xf32>
    %229 = arith.addf %227, %228 : vector<2x32xf32>
    %230 = math.tanh %229 : vector<2x32xf32>
    %231 = arith.mulf %226, %230 : vector<2x32xf32>
    %232 = arith.index_cast %c3_i32 : i32 to index
    %c0_131 = arith.constant 0 : index
    %c0_132 = arith.constant 0 : index
    %233 = vector.load %arg3[%232, %c0_131, %c0_132] : memref<8x2x32xf32, #tpu.memory_space<vmem>>, vector<1x2x32xf32>
    %234 = vector.shape_cast %233 : vector<1x2x32xf32> to vector<2x32xf32>
    %cst_133 = arith.constant 0.000000e+00 : f32
    %235 = vector.broadcast %cst_133 : f32 to vector<2x32xf32>
    %236 = arith.cmpf ogt, %234, %235 : vector<2x32xf32>
    %237 = arith.select %236, %229, %189 : vector<2x32xi1>, vector<2x32xf32>
    %c0_134 = arith.constant 0 : index
    %c0_135 = arith.constant 0 : index
    %238 = vector.load %arg7[%c0_134, %c0_135] : memref<2x32xf32, #tpu.memory_space<vmem>>, vector<2x32xf32>
    tpu.vector_store %arg7[%c0_134, %c0_135], %237 {strides = array<i32>} : memref<2x32xf32, #tpu.memory_space<vmem>>, vector<2x32xf32>,
    %239 = arith.select %236, %231, %188 : vector<2x32xi1>, vector<2x32xf32>
    %c0_136 = arith.constant 0 : index
    %c0_137 = arith.constant 0 : index
    %240 = vector.load %arg6[%c0_136, %c0_137] : memref<2x32xf32, #tpu.memory_space<vmem>>, vector<2x32xf32>
    tpu.vector_store %arg6[%c0_136, %c0_137], %239 {strides = array<i32>} : memref<2x32xf32, #tpu.memory_space<vmem>>, vector<2x32xf32>,
    %cst_138 = arith.constant 0.000000e+00 : f32
    %241 = vector.broadcast %cst_138 : f32 to vector<2x32xf32>
    %242 = arith.select %236, %231, %241 : vector<2x32xi1>, vector<2x32xf32>
    %243 = arith.index_cast %c3_i32 : i32 to index
    %c0_139 = arith.constant 0 : index
    %c0_140 = arith.constant 0 : index
    %244 = vector.load %arg5[%243, %c0_139, %c0_140] : memref<8x2x32xf32, #tpu.memory_space<vmem>>, vector<1x2x32xf32>
    %245 = vector.shape_cast %244 : vector<1x2x32xf32> to vector<2x32xf32>
    %246 = vector.shape_cast %242 : vector<2x32xf32> to vector<1x2x32xf32>
    tpu.vector_store %arg5[%243, %c0_139, %c0_140], %246 {strides = array<i32>} : memref<8x2x32xf32, #tpu.memory_space<vmem>>, vector<1x2x32xf32>,
    %c4_i32 = arith.constant 4 : i32
    %c0_141 = arith.constant 0 : index
    %c0_142 = arith.constant 0 : index
    %247 = vector.load %arg6[%c0_141, %c0_142] : memref<2x32xf32, #tpu.memory_space<vmem>>, vector<2x32xf32>
    %c0_143 = arith.constant 0 : index
    %c0_144 = arith.constant 0 : index
    %248 = vector.load %arg7[%c0_143, %c0_144] : memref<2x32xf32, #tpu.memory_space<vmem>>, vector<2x32xf32>
    %249 = arith.truncf %247 : vector<2x32xf32> to vector<2x32xbf16>
    %c0_145 = arith.constant 0 : index
    %250 = arith.index_cast %c4_i32 : i32 to index
    %c0_146 = arith.constant 0 : index
    %c0_147 = arith.constant 0 : index
    %251 = vector.load %arg2[%c0_145, %250, %c0_146, %c0_147] : memref<4x8x2x32xf32, #tpu.memory_space<vmem>>, vector<1x1x2x32xf32>
    %252 = vector.shape_cast %251 : vector<1x1x2x32xf32> to vector<2x32xf32>
    %cst_148 = arith.constant dense<0.000000e+00> : vector<2x32xf32>
    %253 = tpu.matmul %249, %4, %cst_148 {dimension_numbers = #tpu.dot_dimension_numbers<[1], [0], [0], [1], [0, 0, 1, 1], [], []>} : vector<2x32xbf16>, vector<32x32xbf16>, vector<2x32xf32> -> vector<2x32xf32>
    %254 = arith.addf %252, %253 : vector<2x32xf32>
    %c1_149 = arith.constant 1 : index
    %255 = arith.index_cast %c4_i32 : i32 to index
    %c0_150 = arith.constant 0 : index
    %c0_151 = arith.constant 0 : index
    %256 = vector.load %arg2[%c1_149, %255, %c0_150, %c0_151] : memref<4x8x2x32xf32, #tpu.memory_space<vmem>>, vector<1x1x2x32xf32>
    %257 = vector.shape_cast %256 : vector<1x1x2x32xf32> to vector<2x32xf32>
    %cst_152 = arith.constant dense<0.000000e+00> : vector<2x32xf32>
    %258 = tpu.matmul %249, %6, %cst_152 {dimension_numbers = #tpu.dot_dimension_numbers<[1], [0], [0], [1], [0, 0, 1, 1], [], []>} : vector<2x32xbf16>, vector<32x32xbf16>, vector<2x32xf32> -> vector<2x32xf32>
    %259 = arith.addf %257, %258 : vector<2x32xf32>
    %c2_153 = arith.constant 2 : index
    %260 = arith.index_cast %c4_i32 : i32 to index
    %c0_154 = arith.constant 0 : index
    %c0_155 = arith.constant 0 : index
    %261 = vector.load %arg2[%c2_153, %260, %c0_154, %c0_155] : memref<4x8x2x32xf32, #tpu.memory_space<vmem>>, vector<1x1x2x32xf32>
    %262 = vector.shape_cast %261 : vector<1x1x2x32xf32> to vector<2x32xf32>
    %cst_156 = arith.constant dense<0.000000e+00> : vector<2x32xf32>
    %263 = tpu.matmul %249, %8, %cst_156 {dimension_numbers = #tpu.dot_dimension_numbers<[1], [0], [0], [1], [0, 0, 1, 1], [], []>} : vector<2x32xbf16>, vector<32x32xbf16>, vector<2x32xf32> -> vector<2x32xf32>
    %264 = arith.addf %262, %263 : vector<2x32xf32>
    %c3_157 = arith.constant 3 : index
    %265 = arith.index_cast %c4_i32 : i32 to index
    %c0_158 = arith.constant 0 : index
    %c0_159 = arith.constant 0 : index
    %266 = vector.load %arg2[%c3_157, %265, %c0_158, %c0_159] : memref<4x8x2x32xf32, #tpu.memory_space<vmem>>, vector<1x1x2x32xf32>
    %267 = vector.shape_cast %266 : vector<1x1x2x32xf32> to vector<2x32xf32>
    %cst_160 = arith.constant dense<0.000000e+00> : vector<2x32xf32>
    %268 = tpu.matmul %249, %10, %cst_160 {dimension_numbers = #tpu.dot_dimension_numbers<[1], [0], [0], [1], [0, 0, 1, 1], [], []>} : vector<2x32xbf16>, vector<32x32xbf16>, vector<2x32xf32> -> vector<2x32xf32>
    %269 = arith.addf %267, %268 : vector<2x32xf32>
    %270 = arith.negf %254 : vector<2x32xf32>
    %271 = math.exp %270 : vector<2x32xf32>
    %cst_161 = arith.constant 1.000000e+00 : f32
    %272 = vector.broadcast %cst_161 : f32 to vector<2x32xf32>
    %273 = arith.addf %272, %271 : vector<2x32xf32>
    %274 = arith.divf %272, %273 : vector<2x32xf32>
    %275 = arith.negf %259 : vector<2x32xf32>
    %276 = math.exp %275 : vector<2x32xf32>
    %cst_162 = arith.constant 1.000000e+00 : f32
    %277 = vector.broadcast %cst_162 : f32 to vector<2x32xf32>
    %278 = arith.addf %277, %276 : vector<2x32xf32>
    %279 = arith.divf %277, %278 : vector<2x32xf32>
    %280 = math.tanh %264 : vector<2x32xf32>
    %281 = arith.negf %269 : vector<2x32xf32>
    %282 = math.exp %281 : vector<2x32xf32>
    %cst_163 = arith.constant 1.000000e+00 : f32
    %283 = vector.broadcast %cst_163 : f32 to vector<2x32xf32>
    %284 = arith.addf %283, %282 : vector<2x32xf32>
    %285 = arith.divf %283, %284 : vector<2x32xf32>
    %286 = arith.mulf %279, %248 : vector<2x32xf32>
    %287 = arith.mulf %274, %280 : vector<2x32xf32>
    %288 = arith.addf %286, %287 : vector<2x32xf32>
    %289 = math.tanh %288 : vector<2x32xf32>
    %290 = arith.mulf %285, %289 : vector<2x32xf32>
    %291 = arith.index_cast %c4_i32 : i32 to index
    %c0_164 = arith.constant 0 : index
    %c0_165 = arith.constant 0 : index
    %292 = vector.load %arg3[%291, %c0_164, %c0_165] : memref<8x2x32xf32, #tpu.memory_space<vmem>>, vector<1x2x32xf32>
    %293 = vector.shape_cast %292 : vector<1x2x32xf32> to vector<2x32xf32>
    %cst_166 = arith.constant 0.000000e+00 : f32
    %294 = vector.broadcast %cst_166 : f32 to vector<2x32xf32>
    %295 = arith.cmpf ogt, %293, %294 : vector<2x32xf32>
    %296 = arith.select %295, %288, %248 : vector<2x32xi1>, vector<2x32xf32>
    %c0_167 = arith.constant 0 : index
    %c0_168 = arith.constant 0 : index
    %297 = vector.load %arg7[%c0_167, %c0_168] : memref<2x32xf32, #tpu.memory_space<vmem>>, vector<2x32xf32>
    tpu.vector_store %arg7[%c0_167, %c0_168], %296 {strides = array<i32>} : memref<2x32xf32, #tpu.memory_space<vmem>>, vector<2x32xf32>,
    %298 = arith.select %295, %290, %247 : vector<2x32xi1>, vector<2x32xf32>
    %c0_169 = arith.constant 0 : index
    %c0_170 = arith.constant 0 : index
    %299 = vector.load %arg6[%c0_169, %c0_170] : memref<2x32xf32, #tpu.memory_space<vmem>>, vector<2x32xf32>
    tpu.vector_store %arg6[%c0_169, %c0_170], %298 {strides = array<i32>} : memref<2x32xf32, #tpu.memory_space<vmem>>, vector<2x32xf32>,
    %cst_171 = arith.constant 0.000000e+00 : f32
    %300 = vector.broadcast %cst_171 : f32 to vector<2x32xf32>
    %301 = arith.select %295, %290, %300 : vector<2x32xi1>, vector<2x32xf32>
    %302 = arith.index_cast %c4_i32 : i32 to index
    %c0_172 = arith.constant 0 : index
    %c0_173 = arith.constant 0 : index
    %303 = vector.load %arg5[%302, %c0_172, %c0_173] : memref<8x2x32xf32, #tpu.memory_space<vmem>>, vector<1x2x32xf32>
    %304 = vector.shape_cast %303 : vector<1x2x32xf32> to vector<2x32xf32>
    %305 = vector.shape_cast %301 : vector<2x32xf32> to vector<1x2x32xf32>
    tpu.vector_store %arg5[%302, %c0_172, %c0_173], %305 {strides = array<i32>} : memref<8x2x32xf32, #tpu.memory_space<vmem>>, vector<1x2x32xf32>,
    %c5_i32 = arith.constant 5 : i32
    %c0_174 = arith.constant 0 : index
    %c0_175 = arith.constant 0 : index
    %306 = vector.load %arg6[%c0_174, %c0_175] : memref<2x32xf32, #tpu.memory_space<vmem>>, vector<2x32xf32>
    %c0_176 = arith.constant 0 : index
    %c0_177 = arith.constant 0 : index
    %307 = vector.load %arg7[%c0_176, %c0_177] : memref<2x32xf32, #tpu.memory_space<vmem>>, vector<2x32xf32>
    %308 = arith.truncf %306 : vector<2x32xf32> to vector<2x32xbf16>
    %c0_178 = arith.constant 0 : index
    %309 = arith.index_cast %c5_i32 : i32 to index
    %c0_179 = arith.constant 0 : index
    %c0_180 = arith.constant 0 : index
    %310 = vector.load %arg2[%c0_178, %309, %c0_179, %c0_180] : memref<4x8x2x32xf32, #tpu.memory_space<vmem>>, vector<1x1x2x32xf32>
    %311 = vector.shape_cast %310 : vector<1x1x2x32xf32> to vector<2x32xf32>
    %cst_181 = arith.constant dense<0.000000e+00> : vector<2x32xf32>
    %312 = tpu.matmul %308, %4, %cst_181 {dimension_numbers = #tpu.dot_dimension_numbers<[1], [0], [0], [1], [0, 0, 1, 1], [], []>} : vector<2x32xbf16>, vector<32x32xbf16>, vector<2x32xf32> -> vector<2x32xf32>
    %313 = arith.addf %311, %312 : vector<2x32xf32>
    %c1_182 = arith.constant 1 : index
    %314 = arith.index_cast %c5_i32 : i32 to index
    %c0_183 = arith.constant 0 : index
    %c0_184 = arith.constant 0 : index
    %315 = vector.load %arg2[%c1_182, %314, %c0_183, %c0_184] : memref<4x8x2x32xf32, #tpu.memory_space<vmem>>, vector<1x1x2x32xf32>
    %316 = vector.shape_cast %315 : vector<1x1x2x32xf32> to vector<2x32xf32>
    %cst_185 = arith.constant dense<0.000000e+00> : vector<2x32xf32>
    %317 = tpu.matmul %308, %6, %cst_185 {dimension_numbers = #tpu.dot_dimension_numbers<[1], [0], [0], [1], [0, 0, 1, 1], [], []>} : vector<2x32xbf16>, vector<32x32xbf16>, vector<2x32xf32> -> vector<2x32xf32>
    %318 = arith.addf %316, %317 : vector<2x32xf32>
    %c2_186 = arith.constant 2 : index
    %319 = arith.index_cast %c5_i32 : i32 to index
    %c0_187 = arith.constant 0 : index
    %c0_188 = arith.constant 0 : index
    %320 = vector.load %arg2[%c2_186, %319, %c0_187, %c0_188] : memref<4x8x2x32xf32, #tpu.memory_space<vmem>>, vector<1x1x2x32xf32>
    %321 = vector.shape_cast %320 : vector<1x1x2x32xf32> to vector<2x32xf32>
    %cst_189 = arith.constant dense<0.000000e+00> : vector<2x32xf32>
    %322 = tpu.matmul %308, %8, %cst_189 {dimension_numbers = #tpu.dot_dimension_numbers<[1], [0], [0], [1], [0, 0, 1, 1], [], []>} : vector<2x32xbf16>, vector<32x32xbf16>, vector<2x32xf32> -> vector<2x32xf32>
    %323 = arith.addf %321, %322 : vector<2x32xf32>
    %c3_190 = arith.constant 3 : index
    %324 = arith.index_cast %c5_i32 : i32 to index
    %c0_191 = arith.constant 0 : index
    %c0_192 = arith.constant 0 : index
    %325 = vector.load %arg2[%c3_190, %324, %c0_191, %c0_192] : memref<4x8x2x32xf32, #tpu.memory_space<vmem>>, vector<1x1x2x32xf32>
    %326 = vector.shape_cast %325 : vector<1x1x2x32xf32> to vector<2x32xf32>
    %cst_193 = arith.constant dense<0.000000e+00> : vector<2x32xf32>
    %327 = tpu.matmul %308, %10, %cst_193 {dimension_numbers = #tpu.dot_dimension_numbers<[1], [0], [0], [1], [0, 0, 1, 1], [], []>} : vector<2x32xbf16>, vector<32x32xbf16>, vector<2x32xf32> -> vector<2x32xf32>
    %328 = arith.addf %326, %327 : vector<2x32xf32>
    %329 = arith.negf %313 : vector<2x32xf32>
    %330 = math.exp %329 : vector<2x32xf32>
    %cst_194 = arith.constant 1.000000e+00 : f32
    %331 = vector.broadcast %cst_194 : f32 to vector<2x32xf32>
    %332 = arith.addf %331, %330 : vector<2x32xf32>
    %333 = arith.divf %331, %332 : vector<2x32xf32>
    %334 = arith.negf %318 : vector<2x32xf32>
    %335 = math.exp %334 : vector<2x32xf32>
    %cst_195 = arith.constant 1.000000e+00 : f32
    %336 = vector.broadcast %cst_195 : f32 to vector<2x32xf32>
    %337 = arith.addf %336, %335 : vector<2x32xf32>
    %338 = arith.divf %336, %337 : vector<2x32xf32>
    %339 = math.tanh %323 : vector<2x32xf32>
    %340 = arith.negf %328 : vector<2x32xf32>
    %341 = math.exp %340 : vector<2x32xf32>
    %cst_196 = arith.constant 1.000000e+00 : f32
    %342 = vector.broadcast %cst_196 : f32 to vector<2x32xf32>
    %343 = arith.addf %342, %341 : vector<2x32xf32>
    %344 = arith.divf %342, %343 : vector<2x32xf32>
    %345 = arith.mulf %338, %307 : vector<2x32xf32>
    %346 = arith.mulf %333, %339 : vector<2x32xf32>
    %347 = arith.addf %345, %346 : vector<2x32xf32>
    %348 = math.tanh %347 : vector<2x32xf32>
    %349 = arith.mulf %344, %348 : vector<2x32xf32>
    %350 = arith.index_cast %c5_i32 : i32 to index
    %c0_197 = arith.constant 0 : index
    %c0_198 = arith.constant 0 : index
    %351 = vector.load %arg3[%350, %c0_197, %c0_198] : memref<8x2x32xf32, #tpu.memory_space<vmem>>, vector<1x2x32xf32>
    %352 = vector.shape_cast %351 : vector<1x2x32xf32> to vector<2x32xf32>
    %cst_199 = arith.constant 0.000000e+00 : f32
    %353 = vector.broadcast %cst_199 : f32 to vector<2x32xf32>
    %354 = arith.cmpf ogt, %352, %353 : vector<2x32xf32>
    %355 = arith.select %354, %347, %307 : vector<2x32xi1>, vector<2x32xf32>
    %c0_200 = arith.constant 0 : index
    %c0_201 = arith.constant 0 : index
    %356 = vector.load %arg7[%c0_200, %c0_201] : memref<2x32xf32, #tpu.memory_space<vmem>>, vector<2x32xf32>
    tpu.vector_store %arg7[%c0_200, %c0_201], %355 {strides = array<i32>} : memref<2x32xf32, #tpu.memory_space<vmem>>, vector<2x32xf32>,
    %357 = arith.select %354, %349, %306 : vector<2x32xi1>, vector<2x32xf32>
    %c0_202 = arith.constant 0 : index
    %c0_203 = arith.constant 0 : index
    %358 = vector.load %arg6[%c0_202, %c0_203] : memref<2x32xf32, #tpu.memory_space<vmem>>, vector<2x32xf32>
    tpu.vector_store %arg6[%c0_202, %c0_203], %357 {strides = array<i32>} : memref<2x32xf32, #tpu.memory_space<vmem>>, vector<2x32xf32>,
    %cst_204 = arith.constant 0.000000e+00 : f32
    %359 = vector.broadcast %cst_204 : f32 to vector<2x32xf32>
    %360 = arith.select %354, %349, %359 : vector<2x32xi1>, vector<2x32xf32>
    %361 = arith.index_cast %c5_i32 : i32 to index
    %c0_205 = arith.constant 0 : index
    %c0_206 = arith.constant 0 : index
    %362 = vector.load %arg5[%361, %c0_205, %c0_206] : memref<8x2x32xf32, #tpu.memory_space<vmem>>, vector<1x2x32xf32>
    %363 = vector.shape_cast %362 : vector<1x2x32xf32> to vector<2x32xf32>
    %364 = vector.shape_cast %360 : vector<2x32xf32> to vector<1x2x32xf32>
    tpu.vector_store %arg5[%361, %c0_205, %c0_206], %364 {strides = array<i32>} : memref<8x2x32xf32, #tpu.memory_space<vmem>>, vector<1x2x32xf32>,
    %c6_i32 = arith.constant 6 : i32
    %c0_207 = arith.constant 0 : index
    %c0_208 = arith.constant 0 : index
    %365 = vector.load %arg6[%c0_207, %c0_208] : memref<2x32xf32, #tpu.memory_space<vmem>>, vector<2x32xf32>
    %c0_209 = arith.constant 0 : index
    %c0_210 = arith.constant 0 : index
    %366 = vector.load %arg7[%c0_209, %c0_210] : memref<2x32xf32, #tpu.memory_space<vmem>>, vector<2x32xf32>
    %367 = arith.truncf %365 : vector<2x32xf32> to vector<2x32xbf16>
    %c0_211 = arith.constant 0 : index
    %368 = arith.index_cast %c6_i32 : i32 to index
    %c0_212 = arith.constant 0 : index
    %c0_213 = arith.constant 0 : index
    %369 = vector.load %arg2[%c0_211, %368, %c0_212, %c0_213] : memref<4x8x2x32xf32, #tpu.memory_space<vmem>>, vector<1x1x2x32xf32>
    %370 = vector.shape_cast %369 : vector<1x1x2x32xf32> to vector<2x32xf32>
    %cst_214 = arith.constant dense<0.000000e+00> : vector<2x32xf32>
    %371 = tpu.matmul %367, %4, %cst_214 {dimension_numbers = #tpu.dot_dimension_numbers<[1], [0], [0], [1], [0, 0, 1, 1], [], []>} : vector<2x32xbf16>, vector<32x32xbf16>, vector<2x32xf32> -> vector<2x32xf32>
    %372 = arith.addf %370, %371 : vector<2x32xf32>
    %c1_215 = arith.constant 1 : index
    %373 = arith.index_cast %c6_i32 : i32 to index
    %c0_216 = arith.constant 0 : index
    %c0_217 = arith.constant 0 : index
    %374 = vector.load %arg2[%c1_215, %373, %c0_216, %c0_217] : memref<4x8x2x32xf32, #tpu.memory_space<vmem>>, vector<1x1x2x32xf32>
    %375 = vector.shape_cast %374 : vector<1x1x2x32xf32> to vector<2x32xf32>
    %cst_218 = arith.constant dense<0.000000e+00> : vector<2x32xf32>
    %376 = tpu.matmul %367, %6, %cst_218 {dimension_numbers = #tpu.dot_dimension_numbers<[1], [0], [0], [1], [0, 0, 1, 1], [], []>} : vector<2x32xbf16>, vector<32x32xbf16>, vector<2x32xf32> -> vector<2x32xf32>
    %377 = arith.addf %375, %376 : vector<2x32xf32>
    %c2_219 = arith.constant 2 : index
    %378 = arith.index_cast %c6_i32 : i32 to index
    %c0_220 = arith.constant 0 : index
    %c0_221 = arith.constant 0 : index
    %379 = vector.load %arg2[%c2_219, %378, %c0_220, %c0_221] : memref<4x8x2x32xf32, #tpu.memory_space<vmem>>, vector<1x1x2x32xf32>
    %380 = vector.shape_cast %379 : vector<1x1x2x32xf32> to vector<2x32xf32>
    %cst_222 = arith.constant dense<0.000000e+00> : vector<2x32xf32>
    %381 = tpu.matmul %367, %8, %cst_222 {dimension_numbers = #tpu.dot_dimension_numbers<[1], [0], [0], [1], [0, 0, 1, 1], [], []>} : vector<2x32xbf16>, vector<32x32xbf16>, vector<2x32xf32> -> vector<2x32xf32>
    %382 = arith.addf %380, %381 : vector<2x32xf32>
    %c3_223 = arith.constant 3 : index
    %383 = arith.index_cast %c6_i32 : i32 to index
    %c0_224 = arith.constant 0 : index
    %c0_225 = arith.constant 0 : index
    %384 = vector.load %arg2[%c3_223, %383, %c0_224, %c0_225] : memref<4x8x2x32xf32, #tpu.memory_space<vmem>>, vector<1x1x2x32xf32>
    %385 = vector.shape_cast %384 : vector<1x1x2x32xf32> to vector<2x32xf32>
    %cst_226 = arith.constant dense<0.000000e+00> : vector<2x32xf32>
    %386 = tpu.matmul %367, %10, %cst_226 {dimension_numbers = #tpu.dot_dimension_numbers<[1], [0], [0], [1], [0, 0, 1, 1], [], []>} : vector<2x32xbf16>, vector<32x32xbf16>, vector<2x32xf32> -> vector<2x32xf32>
    %387 = arith.addf %385, %386 : vector<2x32xf32>
    %388 = arith.negf %372 : vector<2x32xf32>
    %389 = math.exp %388 : vector<2x32xf32>
    %cst_227 = arith.constant 1.000000e+00 : f32
    %390 = vector.broadcast %cst_227 : f32 to vector<2x32xf32>
    %391 = arith.addf %390, %389 : vector<2x32xf32>
    %392 = arith.divf %390, %391 : vector<2x32xf32>
    %393 = arith.negf %377 : vector<2x32xf32>
    %394 = math.exp %393 : vector<2x32xf32>
    %cst_228 = arith.constant 1.000000e+00 : f32
    %395 = vector.broadcast %cst_228 : f32 to vector<2x32xf32>
    %396 = arith.addf %395, %394 : vector<2x32xf32>
    %397 = arith.divf %395, %396 : vector<2x32xf32>
    %398 = math.tanh %382 : vector<2x32xf32>
    %399 = arith.negf %387 : vector<2x32xf32>
    %400 = math.exp %399 : vector<2x32xf32>
    %cst_229 = arith.constant 1.000000e+00 : f32
    %401 = vector.broadcast %cst_229 : f32 to vector<2x32xf32>
    %402 = arith.addf %401, %400 : vector<2x32xf32>
    %403 = arith.divf %401, %402 : vector<2x32xf32>
    %404 = arith.mulf %397, %366 : vector<2x32xf32>
    %405 = arith.mulf %392, %398 : vector<2x32xf32>
    %406 = arith.addf %404, %405 : vector<2x32xf32>
    %407 = math.tanh %406 : vector<2x32xf32>
    %408 = arith.mulf %403, %407 : vector<2x32xf32>
    %409 = arith.index_cast %c6_i32 : i32 to index
    %c0_230 = arith.constant 0 : index
    %c0_231 = arith.constant 0 : index
    %410 = vector.load %arg3[%409, %c0_230, %c0_231] : memref<8x2x32xf32, #tpu.memory_space<vmem>>, vector<1x2x32xf32>
    %411 = vector.shape_cast %410 : vector<1x2x32xf32> to vector<2x32xf32>
    %cst_232 = arith.constant 0.000000e+00 : f32
    %412 = vector.broadcast %cst_232 : f32 to vector<2x32xf32>
    %413 = arith.cmpf ogt, %411, %412 : vector<2x32xf32>
    %414 = arith.select %413, %406, %366 : vector<2x32xi1>, vector<2x32xf32>
    %c0_233 = arith.constant 0 : index
    %c0_234 = arith.constant 0 : index
    %415 = vector.load %arg7[%c0_233, %c0_234] : memref<2x32xf32, #tpu.memory_space<vmem>>, vector<2x32xf32>
    tpu.vector_store %arg7[%c0_233, %c0_234], %414 {strides = array<i32>} : memref<2x32xf32, #tpu.memory_space<vmem>>, vector<2x32xf32>,
    %416 = arith.select %413, %408, %365 : vector<2x32xi1>, vector<2x32xf32>
    %c0_235 = arith.constant 0 : index
    %c0_236 = arith.constant 0 : index
    %417 = vector.load %arg6[%c0_235, %c0_236] : memref<2x32xf32, #tpu.memory_space<vmem>>, vector<2x32xf32>
    tpu.vector_store %arg6[%c0_235, %c0_236], %416 {strides = array<i32>} : memref<2x32xf32, #tpu.memory_space<vmem>>, vector<2x32xf32>,
    %cst_237 = arith.constant 0.000000e+00 : f32
    %418 = vector.broadcast %cst_237 : f32 to vector<2x32xf32>
    %419 = arith.select %413, %408, %418 : vector<2x32xi1>, vector<2x32xf32>
    %420 = arith.index_cast %c6_i32 : i32 to index
    %c0_238 = arith.constant 0 : index
    %c0_239 = arith.constant 0 : index
    %421 = vector.load %arg5[%420, %c0_238, %c0_239] : memref<8x2x32xf32, #tpu.memory_space<vmem>>, vector<1x2x32xf32>
    %422 = vector.shape_cast %421 : vector<1x2x32xf32> to vector<2x32xf32>
    %423 = vector.shape_cast %419 : vector<2x32xf32> to vector<1x2x32xf32>
    tpu.vector_store %arg5[%420, %c0_238, %c0_239], %423 {strides = array<i32>} : memref<8x2x32xf32, #tpu.memory_space<vmem>>, vector<1x2x32xf32>,
    %c7_i32 = arith.constant 7 : i32
    %c0_240 = arith.constant 0 : index
    %c0_241 = arith.constant 0 : index
    %424 = vector.load %arg6[%c0_240, %c0_241] : memref<2x32xf32, #tpu.memory_space<vmem>>, vector<2x32xf32>
    %c0_242 = arith.constant 0 : index
    %c0_243 = arith.constant 0 : index
    %425 = vector.load %arg7[%c0_242, %c0_243] : memref<2x32xf32, #tpu.memory_space<vmem>>, vector<2x32xf32>
    %426 = arith.truncf %424 : vector<2x32xf32> to vector<2x32xbf16>
    %c0_244 = arith.constant 0 : index
    %427 = arith.index_cast %c7_i32 : i32 to index
    %c0_245 = arith.constant 0 : index
    %c0_246 = arith.constant 0 : index
    %428 = vector.load %arg2[%c0_244, %427, %c0_245, %c0_246] : memref<4x8x2x32xf32, #tpu.memory_space<vmem>>, vector<1x1x2x32xf32>
    %429 = vector.shape_cast %428 : vector<1x1x2x32xf32> to vector<2x32xf32>
    %cst_247 = arith.constant dense<0.000000e+00> : vector<2x32xf32>
    %430 = tpu.matmul %426, %4, %cst_247 {dimension_numbers = #tpu.dot_dimension_numbers<[1], [0], [0], [1], [0, 0, 1, 1], [], []>} : vector<2x32xbf16>, vector<32x32xbf16>, vector<2x32xf32> -> vector<2x32xf32>
    %431 = arith.addf %429, %430 : vector<2x32xf32>
    %c1_248 = arith.constant 1 : index
    %432 = arith.index_cast %c7_i32 : i32 to index
    %c0_249 = arith.constant 0 : index
    %c0_250 = arith.constant 0 : index
    %433 = vector.load %arg2[%c1_248, %432, %c0_249, %c0_250] : memref<4x8x2x32xf32, #tpu.memory_space<vmem>>, vector<1x1x2x32xf32>
    %434 = vector.shape_cast %433 : vector<1x1x2x32xf32> to vector<2x32xf32>
    %cst_251 = arith.constant dense<0.000000e+00> : vector<2x32xf32>
    %435 = tpu.matmul %426, %6, %cst_251 {dimension_numbers = #tpu.dot_dimension_numbers<[1], [0], [0], [1], [0, 0, 1, 1], [], []>} : vector<2x32xbf16>, vector<32x32xbf16>, vector<2x32xf32> -> vector<2x32xf32>
    %436 = arith.addf %434, %435 : vector<2x32xf32>
    %c2_252 = arith.constant 2 : index
    %437 = arith.index_cast %c7_i32 : i32 to index
    %c0_253 = arith.constant 0 : index
    %c0_254 = arith.constant 0 : index
    %438 = vector.load %arg2[%c2_252, %437, %c0_253, %c0_254] : memref<4x8x2x32xf32, #tpu.memory_space<vmem>>, vector<1x1x2x32xf32>
    %439 = vector.shape_cast %438 : vector<1x1x2x32xf32> to vector<2x32xf32>
    %cst_255 = arith.constant dense<0.000000e+00> : vector<2x32xf32>
    %440 = tpu.matmul %426, %8, %cst_255 {dimension_numbers = #tpu.dot_dimension_numbers<[1], [0], [0], [1], [0, 0, 1, 1], [], []>} : vector<2x32xbf16>, vector<32x32xbf16>, vector<2x32xf32> -> vector<2x32xf32>
    %441 = arith.addf %439, %440 : vector<2x32xf32>
    %c3_256 = arith.constant 3 : index
    %442 = arith.index_cast %c7_i32 : i32 to index
    %c0_257 = arith.constant 0 : index
    %c0_258 = arith.constant 0 : index
    %443 = vector.load %arg2[%c3_256, %442, %c0_257, %c0_258] : memref<4x8x2x32xf32, #tpu.memory_space<vmem>>, vector<1x1x2x32xf32>
    %444 = vector.shape_cast %443 : vector<1x1x2x32xf32> to vector<2x32xf32>
    %cst_259 = arith.constant dense<0.000000e+00> : vector<2x32xf32>
    %445 = tpu.matmul %426, %10, %cst_259 {dimension_numbers = #tpu.dot_dimension_numbers<[1], [0], [0], [1], [0, 0, 1, 1], [], []>} : vector<2x32xbf16>, vector<32x32xbf16>, vector<2x32xf32> -> vector<2x32xf32>
    %446 = arith.addf %444, %445 : vector<2x32xf32>
    %447 = arith.negf %431 : vector<2x32xf32>
    %448 = math.exp %447 : vector<2x32xf32>
    %cst_260 = arith.constant 1.000000e+00 : f32
    %449 = vector.broadcast %cst_260 : f32 to vector<2x32xf32>
    %450 = arith.addf %449, %448 : vector<2x32xf32>
    %451 = arith.divf %449, %450 : vector<2x32xf32>
    %452 = arith.negf %436 : vector<2x32xf32>
    %453 = math.exp %452 : vector<2x32xf32>
    %cst_261 = arith.constant 1.000000e+00 : f32
    %454 = vector.broadcast %cst_261 : f32 to vector<2x32xf32>
    %455 = arith.addf %454, %453 : vector<2x32xf32>
    %456 = arith.divf %454, %455 : vector<2x32xf32>
    %457 = math.tanh %441 : vector<2x32xf32>
    %458 = arith.negf %446 : vector<2x32xf32>
    %459 = math.exp %458 : vector<2x32xf32>
    %cst_262 = arith.constant 1.000000e+00 : f32
    %460 = vector.broadcast %cst_262 : f32 to vector<2x32xf32>
    %461 = arith.addf %460, %459 : vector<2x32xf32>
    %462 = arith.divf %460, %461 : vector<2x32xf32>
    %463 = arith.mulf %456, %425 : vector<2x32xf32>
    %464 = arith.mulf %451, %457 : vector<2x32xf32>
    %465 = arith.addf %463, %464 : vector<2x32xf32>
    %466 = math.tanh %465 : vector<2x32xf32>
    %467 = arith.mulf %462, %466 : vector<2x32xf32>
    %468 = arith.index_cast %c7_i32 : i32 to index
    %c0_263 = arith.constant 0 : index
    %c0_264 = arith.constant 0 : index
    %469 = vector.load %arg3[%468, %c0_263, %c0_264] : memref<8x2x32xf32, #tpu.memory_space<vmem>>, vector<1x2x32xf32>
    %470 = vector.shape_cast %469 : vector<1x2x32xf32> to vector<2x32xf32>
    %cst_265 = arith.constant 0.000000e+00 : f32
    %471 = vector.broadcast %cst_265 : f32 to vector<2x32xf32>
    %472 = arith.cmpf ogt, %470, %471 : vector<2x32xf32>
    %473 = arith.select %472, %465, %425 : vector<2x32xi1>, vector<2x32xf32>
    %c0_266 = arith.constant 0 : index
    %c0_267 = arith.constant 0 : index
    %474 = vector.load %arg7[%c0_266, %c0_267] : memref<2x32xf32, #tpu.memory_space<vmem>>, vector<2x32xf32>
    tpu.vector_store %arg7[%c0_266, %c0_267], %473 {strides = array<i32>} : memref<2x32xf32, #tpu.memory_space<vmem>>, vector<2x32xf32>,
    %475 = arith.select %472, %467, %424 : vector<2x32xi1>, vector<2x32xf32>
    %c0_268 = arith.constant 0 : index
    %c0_269 = arith.constant 0 : index
    %476 = vector.load %arg6[%c0_268, %c0_269] : memref<2x32xf32, #tpu.memory_space<vmem>>, vector<2x32xf32>
    tpu.vector_store %arg6[%c0_268, %c0_269], %475 {strides = array<i32>} : memref<2x32xf32, #tpu.memory_space<vmem>>, vector<2x32xf32>,
    %cst_270 = arith.constant 0.000000e+00 : f32
    %477 = vector.broadcast %cst_270 : f32 to vector<2x32xf32>
    %478 = arith.select %472, %467, %477 : vector<2x32xi1>, vector<2x32xf32>
    %479 = arith.index_cast %c7_i32 : i32 to index
    %c0_271 = arith.constant 0 : index
    %c0_272 = arith.constant 0 : index
    %480 = vector.load %arg5[%479, %c0_271, %c0_272] : memref<8x2x32xf32, #tpu.memory_space<vmem>>, vector<1x2x32xf32>
    %481 = vector.shape_cast %480 : vector<1x2x32xf32> to vector<2x32xf32>
    %482 = vector.shape_cast %478 : vector<2x32xf32> to vector<1x2x32xf32>
    tpu.vector_store %arg5[%479, %c0_271, %c0_272], %482 {strides = array<i32>} : memref<8x2x32xf32, #tpu.memory_space<vmem>>, vector<1x2x32xf32>,
    %c8_i32 = arith.constant 8 : i32
    return
  }
  func.func @transform_0(%arg0: i32, %arg1: i32) -> (i32, i32, i32, i32) {
    %c0_i32 = arith.constant 0 : i32
    %c0_i32_0 = arith.constant 0 : i32
    %c0_i32_1 = arith.constant 0 : i32
    return %c0_i32, %arg1, %arg0, %c0_i32_0 : i32, i32, i32, i32
  }
  func.func @transform_1(%arg0: i32, %arg1: i32) -> (i32, i32, i32) {
    %c0_i32 = arith.constant 0 : i32
    %c0_i32_0 = arith.constant 0 : i32
    return %arg1, %arg0, %c0_i32 : i32, i32, i32
  }
  func.func @transform_2(%arg0: i32, %arg1: i32) -> (i32, i32, i32) {
    %c0_i32 = arith.constant 0 : i32
    %c0_i32_0 = arith.constant 0 : i32
    %c0_i32_1 = arith.constant 0 : i32
    %c0_i32_2 = arith.constant 0 : i32
    return %c0_i32, %c0_i32_0, %c0_i32_1 : i32, i32, i32
  }
  func.func @transform_3(%arg0: i32, %arg1: i32) -> (i32, i32, i32) {
    %c0_i32 = arith.constant 0 : i32
    %c0_i32_0 = arith.constant 0 : i32
    return %arg1, %arg0, %c0_i32 : i32, i32, i32
  }
}

</mosaic_0001>

<llo_original>
// kernel: tpu_custom_call.1
$region0: #{tpu_custom_call.1}
  #allocation0 [shape = 'u32[]', space=smem, size = 0x4, offset = 0x4, fixed_abs, tag = 'smem constant byte address 0x4 - core index']
  #allocation1 [shape = 'u32[144,128]{1,0:T(1,128)}', space=vmem, size = 0x12000, scoped, tag = 'internal scratch']
  #allocation2 [shape = 'f32[2,32]{1,0:T(2,128)}', space=vmem, size = 0x400, scoped, tag = 'scratch operand']
  #allocation3 [shape = 'f32[2,32]{1,0:T(2,128)}', space=vmem, size = 0x400, scoped, tag = 'scratch operand']
  %s0 = inlined_call_operand.hbm [shape: f32[4,8,2,32], index: 0, kind: input, shape index: {}]
  %s1 = inlined_call_operand.hbm [shape: f32[8,2,32], index: 1, kind: input, shape index: {}]
  %s2 = inlined_call_operand.hbm [shape: bf16[4,32,32], index: 2, kind: input, shape index: {}]
  %s3 = inlined_call_operand.hbm [shape: f32[8,2,32], index: 3, kind: output, shape index: {}]
  %s4 = sld [smem:[#allocation0]]
  $region38: #{tpu_custom_call.1} parent=0
    _
  %s6 = ssub.s32 1, %s4
  %s7 = scalar_select 0, %s6, %s4
  $region1: #{tpu_custom_call.1} parent=0
    #allocation4 [shape = 'u8[32768]{0}', space=vmem, size = 0x8000, scoped, tag = 'input window, operand 0, single buffered']
    #allocation5 [shape = 's32[1]{0}', space=sflag, size = 0x4, scoped, tag = 'scoped memory for tpu_custom_call.1']
    #allocation6 [shape = 's32[1]{0}', space=sflag, size = 0x4, scoped, tag = 'scoped memory for tpu_custom_call.1']
    #allocation7 [shape = 'u8[8192]{0}', space=vmem, size = 0x2000, scoped, tag = 'input window, operand 1, single buffered']
    #allocation8 [shape = 's32[1]{0}', space=sflag, size = 0x4, scoped, tag = 'scoped memory for tpu_custom_call.1']
    #allocation9 [shape = 'u8[32768]{0}', space=vmem, size = 0x8000, scoped, tag = 'input window, operand 2, single buffered']
    #allocation10 [shape = 'u8[8192]{0}', space=vmem, size = 0x2000, scoped, tag = 'output window, operand 0, single buffered']
    %8 = vsyncpa [#allocation5], 0
    %9 = vsyncpa [#allocation8], 0
    %10 = vsyncpa [#allocation6], 0
    // Predicated region
    $region2: #{tpu_custom_call.1} parent=1 // pred_check
      _
    $region3: #{tpu_custom_call.1} parent=1 // pred_check_branch
      %12 = sbr.rel (0) target = $region5
    $region4: #{tpu_custom_call.1} parent=1 // pred_region
      %s14 = ssub.s32 1024, 1024
      %15 = vsyncadd [#allocation5], %s14
      %s16 = sshll.u32 [#allocation4], 4
      %s17 = int_to_ptr.vmem [resolvable:$true] %s16
      %22 = dma.hbm_to_vmem [thread:$0]  %s0, 1024, %s17, [#allocation5], 32, 32, 2
    $region5: #{tpu_custom_call.1} parent=1 // pred_fallthru
      _
    // Predicated region
    $region6: #{tpu_custom_call.1} parent=1 // pred_check
      _
    $region7: #{tpu_custom_call.1} parent=1 // pred_check_branch
      %24 = sbr.rel (0) target = $region9
    $region8: #{tpu_custom_call.1} parent=1 // pred_region
      %s26 = ssub.s32 256, 256
      %27 = vsyncadd [#allocation8], %s26
      %s28 = sshll.u32 [#allocation7], 4
      %s29 = int_to_ptr.vmem [resolvable:$true] %s28
      %34 = dma.hbm_to_vmem [thread:$0]  %s1, 256, %s29, [#allocation8], 32, 32, 2
    $region9: #{tpu_custom_call.1} parent=1 // pred_fallthru
      _
    // Predicated region
    $region10: #{tpu_custom_call.1} parent=1 // pred_check
      _
    $region11: #{tpu_custom_call.1} parent=1 // pred_check_branch
      %36 = sbr.rel (0) target = $region13
    $region12: #{tpu_custom_call.1} parent=1 // pred_region
      %s38 = ssub.s32 1024, 1024
      %39 = vsyncadd [#allocation8], %s38
      %s40 = sshll.u32 [#allocation9], 4
      %s41 = int_to_ptr.vmem [resolvable:$true] %s40
      %46 = dma.hbm_to_vmem [thread:$0]  %s2, 1024, %s41, [#allocation8], 64, 64, 4
    $region13: #{tpu_custom_call.1} parent=1 // pred_fallthru
      _
    // Predicated region
    $region14: #{tpu_custom_call.1} parent=1 // pred_check
      _
    $region15: #{tpu_custom_call.1} parent=1 // pred_check_branch
      %48 = sbr.rel (0) target = $region17
    $region16: #{tpu_custom_call.1} parent=1 // pred_region
      %49 = dma.done [#allocation5], 1024
    $region17: #{tpu_custom_call.1} parent=1 // pred_fallthru
      _
    // Predicated region
    $region18: #{tpu_custom_call.1} parent=1 // pred_check
      _
    $region19: #{tpu_custom_call.1} parent=1 // pred_check_branch
      %51 = sbr.rel (0) target = $region21
    $region20: #{tpu_custom_call.1} parent=1 // pred_region
      %52 = dma.done [#allocation8], 256
    $region21: #{tpu_custom_call.1} parent=1 // pred_fallthru
      _
    // Predicated region
    $region22: #{tpu_custom_call.1} parent=1 // pred_check
      _
    $region23: #{tpu_custom_call.1} parent=1 // pred_check_branch
      %54 = sbr.rel (0) target = $region25
    $region24: #{tpu_custom_call.1} parent=1 // pred_region
      %55 = dma.done [#allocation8], 1024
    $region25: #{tpu_custom_call.1} parent=1 // pred_fallthru
      _
    %p57 = scmp.eq.s32.totalorder 0, 0
    // Predicated region
    $region26: #{tpu_custom_call.1} parent=1 // pred_check
      %p58 = pneg %p57
    $region27: #{tpu_custom_call.1} parent=1 // pred_check_branch
      %60 = sbr.rel (%p58) target = $region29
    $region28: #{tpu_custom_call.1} parent=1 // pred_region
      %vm61 = vcmask 254976
      %62 = vst.msk [vmem:[#allocation2] sm:$0x3] %vm61, 0.0
      %63 = vst.msk [vmem:[#allocation3] sm:$0x3] %vm61, 0.0
    $region29: #{tpu_custom_call.1} parent=1 // pred_fallthru
      _
    %v64 = vld [vmem:[#allocation9] sm:$0xf]
    %v65 = vld [vmem:[#allocation9 + $0x4] sm:$0xf]
    %v66 = vld [vmem:[#allocation9 + $0x8] sm:$0xf]
    %v67 = vld [vmem:[#allocation9 + $0xc] sm:$0xf]
    %s68 = scalar_lea.vmem [#allocation9], 16
    %v69 = vld [vmem:[%s68] sm:$0xf]
    %v70 = vld [vmem:[%s68 + $0x4] sm:$0xf]
    %v71 = vld [vmem:[%s68 + $0x8] sm:$0xf]
    %v72 = vld [vmem:[%s68 + $0xc] sm:$0xf]
    %s73 = scalar_lea.vmem [#allocation9], 32
    %v74 = vld [vmem:[%s73] sm:$0xf]
    %v75 = vld [vmem:[%s73 + $0x4] sm:$0xf]
    %v76 = vld [vmem:[%s73 + $0x8] sm:$0xf]
    %v77 = vld [vmem:[%s73 + $0xc] sm:$0xf]
    %s78 = scalar_lea.vmem [#allocation9], 48
    %v79 = vld [vmem:[%s78] sm:$0xf]
    %v80 = vld [vmem:[%s78 + $0x4] sm:$0xf]
    %v81 = vld [vmem:[%s78 + $0x8] sm:$0xf]
    %v82 = vld [vmem:[%s78 + $0xc] sm:$0xf]
    %v83 = vld [vmem:[#allocation2] sm:$0x3]
    %v84 = vld [vmem:[#allocation3] sm:$0x3]
    %v85 = vpack.c.bf16 %v83, %v83
    %v86 = vld [vmem:[#allocation4] sm:$0x3]
    %v91 = vunpack.c.l.b16 %v64
    %v92 = vunpack.c.l.b16 %v65
    %v93 = vunpack.c.l.b16 %v66
    %v94 = vunpack.c.l.b16 %v67
    %v95 = vpack.c.b16 %v92, %v91
    %v96 = vpack.c.b16 %v94, %v93
    %vm99 = vcmask 261120
    %v101 = vsel %vm99, %v85, 0
    %103 = vmatprep.subr.bf16.mxu0 0
    %104 = vmatpush1.bf16.msra.mxu0 %v95
    %105 = vmatprep.subr.bf16.mxu0 0
    %106 = vmatpush1.bf16.msra.mxu0 %v96
    %107 = vmatprep.subr.bf16.mxu0 0
    %108 = vmatpush1.bf16.msra.mxu0 0
    %109 = vmatprep.subr.bf16.mxu0 0
    %110 = vmatpush1.bf16.msra.mxu0 0
    %111 = vmatprep.subr.bf16.mxu0 0
    %112 = vmatpush1.bf16.msra.mxu0 0
    %113 = vmatprep.subr.bf16.mxu0 0
    %114 = vmatpush1.bf16.msra.mxu0 0
    %115 = vmatprep.subr.bf16.mxu0 0
    %116 = vmatpush1.bf16.msra.mxu0 0
    %117 = vmatprep.subr.bf16.mxu0 0
    %118 = vmatpush1.bf16.msra.mxu0 0
    %119 = vmatprep.subr.bf16.mxu0 0
    %120 = vmatpush1.bf16.msra.mxu0 0
    %121 = vmatprep.subr.bf16.mxu0 0
    %122 = vmatpush1.bf16.msra.mxu0 0
    %123 = vmatprep.subr.bf16.mxu0 0
    %124 = vmatpush1.bf16.msra.mxu0 0
    %125 = vmatprep.subr.bf16.mxu0 0
    %126 = vmatpush1.bf16.msra.mxu0 0
    %127 = vmatprep.subr.bf16.mxu0 0
    %128 = vmatpush1.bf16.msra.mxu0 0
    %129 = vmatprep.subr.bf16.mxu0 0
    %130 = vmatpush1.bf16.msra.mxu0 0
    %131 = vmatprep.subr.bf16.mxu0 0
    %132 = vmatpush1.bf16.msra.mxu0 0
    %133 = vmatprep.subr.bf16.mxu0 0
    %134 = vmatpush1.bf16.msra.mxu0 0
    %135 = vmatprep.mubr.bf16.mxu0 0
    %136 = vmatmul.mubr.bf16.gmra.mrb[0].mxu0 %v101
    %v137 = vpop.f32.mrb[0].mxu0
    %v138 = vadd.f32 0.0, %v137
    %v139 = vpop.f32.mrb[0].mxu0
    %v140 = vpop.f32.mrb[0].mxu0
    %v141 = vpop.f32.mrb[0].mxu0
    %142 = vdwg.mxu0
    %v143 = vadd.f32 %v86, %v138
    %s144 = scalar_lea.vmem [#allocation4], 16
    %v145 = vld [vmem:[%s144] sm:$0x3]
    %v150 = vunpack.c.l.b16 %v69
    %v151 = vunpack.c.l.b16 %v70
    %v152 = vunpack.c.l.b16 %v71
    %v153 = vunpack.c.l.b16 %v72
    %v154 = vpack.c.b16 %v151, %v150
    %v155 = vpack.c.b16 %v153, %v152
    %158 = vmatprep.subr.bf16.mxu0 0
    %159 = vmatpush1.bf16.msra.mxu0 %v154
    %160 = vmatprep.subr.bf16.mxu0 0
    %161 = vmatpush1.bf16.msra.mxu0 %v155
    %162 = vmatprep.subr.bf16.mxu0 0
    %163 = vmatpush1.bf16.msra.mxu0 0
    %164 = vmatprep.subr.bf16.mxu0 0
    %165 = vmatpush1.bf16.msra.mxu0 0
    %166 = vmatprep.subr.bf16.mxu0 0
    %167 = vmatpush1.bf16.msra.mxu0 0
    %168 = vmatprep.subr.bf16.mxu0 0
    %169 = vmatpush1.bf16.msra.mxu0 0
    %170 = vmatprep.subr.bf16.mxu0 0
    %171 = vmatpush1.bf16.msra.mxu0 0
    %172 = vmatprep.subr.bf16.mxu0 0
    %173 = vmatpush1.bf16.msra.mxu0 0
    %174 = vmatprep.subr.bf16.mxu0 0
    %175 = vmatpush1.bf16.msra.mxu0 0
    %176 = vmatprep.subr.bf16.mxu0 0
    %177 = vmatpush1.bf16.msra.mxu0 0
    %178 = vmatprep.subr.bf16.mxu0 0
    %179 = vmatpush1.bf16.msra.mxu0 0
    %180 = vmatprep.subr.bf16.mxu0 0
    %181 = vmatpush1.bf16.msra.mxu0 0
    %182 = vmatprep.subr.bf16.mxu0 0
    %183 = vmatpush1.bf16.msra.mxu0 0
    %184 = vmatprep.subr.bf16.mxu0 0
    %185 = vmatpush1.bf16.msra.mxu0 0
    %186 = vmatprep.subr.bf16.mxu0 0
    %187 = vmatpush1.bf16.msra.mxu0 0
    %188 = vmatprep.subr.bf16.mxu0 0
    %189 = vmatpush1.bf16.msra.mxu0 0
    %190 = vmatprep.mubr.bf16.mxu0 0
    %191 = vmatmul.mubr.bf16.gmra.mrb[0].mxu0 %v101
    %v192 = vpop.f32.mrb[0].mxu0
    %v193 = vadd.f32 0.0, %v192
    %v194 = vpop.f32.mrb[0].mxu0
    %v195 = vpop.f32.mrb[0].mxu0
    %v196 = vpop.f32.mrb[0].mxu0
    %197 = vdwg.mxu0
    %v198 = vadd.f32 %v145, %v193
    %s199 = scalar_lea.vmem [#allocation4], 32
    %v200 = vld [vmem:[%s199] sm:$0x3]
    %v205 = vunpack.c.l.b16 %v74
    %v206 = vunpack.c.l.b16 %v75
    %v207 = vunpack.c.l.b16 %v76
    %v208 = vunpack.c.l.b16 %v77
    %v209 = vpack.c.b16 %v206, %v205
    %v210 = vpack.c.b16 %v208, %v207
    %213 = vmatprep.subr.bf16.mxu0 0
    %214 = vmatpush1.bf16.msra.mxu0 %v209
    %215 = vmatprep.subr.bf16.mxu0 0
    %216 = vmatpush1.bf16.msra.mxu0 %v210
    %217 = vmatprep.subr.bf16.mxu0 0
    %218 = vmatpush1.bf16.msra.mxu0 0
    %219 = vmatprep.subr.bf16.mxu0 0
    %220 = vmatpush1.bf16.msra.mxu0 0
    %221 = vmatprep.subr.bf16.mxu0 0
    %222 = vmatpush1.bf16.msra.mxu0 0
    %223 = vmatprep.subr.bf16.mxu0 0
    %224 = vmatpush1.bf16.msra.mxu0 0
    %225 = vmatprep.subr.bf16.mxu0 0
    %226 = vmatpush1.bf16.msra.mxu0 0
    %227 = vmatprep.subr.bf16.mxu0 0
    %228 = vmatpush1.bf16.msra.mxu0 0
    %229 = vmatprep.subr.bf16.mxu0 0
    %230 = vmatpush1.bf16.msra.mxu0 0
    %231 = vmatprep.subr.bf16.mxu0 0
    %232 = vmatpush1.bf16.msra.mxu0 0
    %233 = vmatprep.subr.bf16.mxu0 0
    %234 = vmatpush1.bf16.msra.mxu0 0
    %235 = vmatprep.subr.bf16.mxu0 0
    %236 = vmatpush1.bf16.msra.mxu0 0
    %237 = vmatprep.subr.bf16.mxu0 0
    %238 = vmatpush1.bf16.msra.mxu0 0
    %239 = vmatprep.subr.bf16.mxu0 0
    %240 = vmatpush1.bf16.msra.mxu0 0
    %241 = vmatprep.subr.bf16.mxu0 0
    %242 = vmatpush1.bf16.msra.mxu0 0
    %243 = vmatprep.subr.bf16.mxu0 0
    %244 = vmatpush1.bf16.msra.mxu0 0
    %245 = vmatprep.mubr.bf16.mxu0 0
    %246 = vmatmul.mubr.bf16.gmra.mrb[0].mxu0 %v101
    %v247 = vpop.f32.mrb[0].mxu0
    %v248 = vadd.f32 0.0, %v247
    %v249 = vpop.f32.mrb[0].mxu0
    %v250 = vpop.f32.mrb[0].mxu0
    %v251 = vpop.f32.mrb[0].mxu0
    %252 = vdwg.mxu0
    %v253 = vadd.f32 %v200, %v248
    %s254 = scalar_lea.vmem [#allocation4], 48
    %v255 = vld [vmem:[%s254] sm:$0x3]
    %v260 = vunpack.c.l.b16 %v79
    %v261 = vunpack.c.l.b16 %v80
    %v262 = vunpack.c.l.b16 %v81
    %v263 = vunpack.c.l.b16 %v82
    %v264 = vpack.c.b16 %v261, %v260
    %v265 = vpack.c.b16 %v263, %v262
    %268 = vmatprep.subr.bf16.mxu0 0
    %269 = vmatpush1.bf16.msra.mxu0 %v264
    %270 = vmatprep.subr.bf16.mxu0 0
    %271 = vmatpush1.bf16.msra.mxu0 %v265
    %272 = vmatprep.subr.bf16.mxu0 0
    %273 = vmatpush1.bf16.msra.mxu0 0
    %274 = vmatprep.subr.bf16.mxu0 0
    %275 = vmatpush1.bf16.msra.mxu0 0
    %276 = vmatprep.subr.bf16.mxu0 0
    %277 = vmatpush1.bf16.msra.mxu0 0
    %278 = vmatprep.subr.bf16.mxu0 0
    %279 = vmatpush1.bf16.msra.mxu0 0
    %280 = vmatprep.subr.bf16.mxu0 0
    %281 = vmatpush1.bf16.msra.mxu0 0
    %282 = vmatprep.subr.bf16.mxu0 0
    %283 = vmatpush1.bf16.msra.mxu0 0
    %284 = vmatprep.subr.bf16.mxu0 0
    %285 = vmatpush1.bf16.msra.mxu0 0
    %286 = vmatprep.subr.bf16.mxu0 0
    %287 = vmatpush1.bf16.msra.mxu0 0
    %288 = vmatprep.subr.bf16.mxu0 0
    %289 = vmatpush1.bf16.msra.mxu0 0
    %290 = vmatprep.subr.bf16.mxu0 0
    %291 = vmatpush1.bf16.msra.mxu0 0
    %292 = vmatprep.subr.bf16.mxu0 0
    %293 = vmatpush1.bf16.msra.mxu0 0
    %294 = vmatprep.subr.bf16.mxu0 0
    %295 = vmatpush1.bf16.msra.mxu0 0
    %296 = vmatprep.subr.bf16.mxu0 0
    %297 = vmatpush1.bf16.msra.mxu0 0
    %298 = vmatprep.subr.bf16.mxu0 0
    %299 = vmatpush1.bf16.msra.mxu0 0
    %300 = vmatprep.mubr.bf16.mxu0 0
    %301 = vmatmul.mubr.bf16.gmra.mrb[0].mxu0 %v101
    %v302 = vpop.f32.mrb[0].mxu0
    %v303 = vadd.f32 0.0, %v302
    %v304 = vpop.f32.mrb[0].mxu0
    %v305 = vpop.f32.mrb[0].mxu0
    %v306 = vpop.f32.mrb[0].mxu0
    %307 = vdwg.mxu0
    %v308 = vadd.f32 %v255, %v303
    %v309 = vxor.u32 %v143, 2147483648
    %v310 = vmul.f32 %v309, 1.442695
    %v311 = vpow.pop %v310
    %v312 = vadd.f32 %v311, 1.0
    %v313 = vrcp.pop %v312
    %v314 = vmul.f32 1.0, %v313
    %v315 = vxor.u32 %v198, 2147483648
    %v316 = vmul.f32 %v315, 1.442695
    %v317 = vpow.pop %v316
    %v318 = vadd.f32 %v317, 1.0
    %v319 = vrcp.pop %v318
    %v320 = vmul.f32 1.0, %v319
    %v321 = vtanh.pop %v253
    %v322 = vxor.u32 %v308, 2147483648
    %v323 = vmul.f32 %v322, 1.442695
    %v324 = vpow.pop %v323
    %v325 = vadd.f32 %v324, 1.0
    %v326 = vrcp.pop %v325
    %v327 = vmul.f32 1.0, %v326
    %v328 = vmul.f32 %v320, %v84
    %v329 = vmul.f32 %v314, %v321
    %v330 = vadd.f32 %v328, %v329
    %v331 = vtanh.pop %v330
    %v332 = vmul.f32 %v327, %v331
    %v333 = vld [vmem:[#allocation7] sm:$0x3]
    %vm334 = vcmp.gt.f32.partialorder %v333, 0.0
    %v335 = vsel %vm334, %v330, %v84
    %vm336 = vcmask 254976
    %337 = vst.msk [vmem:[#allocation3] sm:$0x3] %vm336, %v335
    %v338 = vsel %vm334, %v332, %v83
    %339 = vst.msk [vmem:[#allocation2] sm:$0x3] %vm336, %v338
    %v340 = vsel %vm334, %v332, 0.0
    %341 = vst.msk [vmem:[#allocation10] sm:$0x3] %vm336, %v340
    %v342 = vld [vmem:[#allocation2] sm:$0x3]
    %v343 = vld [vmem:[#allocation3] sm:$0x3]
    %v344 = vpack.c.bf16 %v342, %v342
    %s345 = scalar_lea.vmem [#allocation4], 2
    %v346 = vld [vmem:[%s345] sm:$0x3]
    %v348 = vsel %vm99, %v344, 0
    %350 = vmatprep.subr.bf16.mxu0 0
    %351 = vmatpush1.bf16.msra.mxu0 %v95
    %352 = vmatprep.subr.bf16.mxu0 0
    %353 = vmatpush1.bf16.msra.mxu0 %v96
    %354 = vmatprep.subr.bf16.mxu0 0
    %355 = vmatpush1.bf16.msra.mxu0 0
    %356 = vmatprep.subr.bf16.mxu0 0
    %357 = vmatpush1.bf16.msra.mxu0 0
    %358 = vmatprep.subr.bf16.mxu0 0
    %359 = vmatpush1.bf16.msra.mxu0 0
    %360 = vmatprep.subr.bf16.mxu0 0
    %361 = vmatpush1.bf16.msra.mxu0 0
    %362 = vmatprep.subr.bf16.mxu0 0
    %363 = vmatpush1.bf16.msra.mxu0 0
    %364 = vmatprep.subr.bf16.mxu0 0
    %365 = vmatpush1.bf16.msra.mxu0 0
    %366 = vmatprep.subr.bf16.mxu0 0
    %367 = vmatpush1.bf16.msra.mxu0 0
    %368 = vmatprep.subr.bf16.mxu0 0
    %369 = vmatpush1.bf16.msra.mxu0 0
    %370 = vmatprep.subr.bf16.mxu0 0
    %371 = vmatpush1.bf16.msra.mxu0 0
    %372 = vmatprep.subr.bf16.mxu0 0
    %373 = vmatpush1.bf16.msra.mxu0 0
    %374 = vmatprep.subr.bf16.mxu0 0
    %375 = vmatpush1.bf16.msra.mxu0 0
    %376 = vmatprep.subr.bf16.mxu0 0
    %377 = vmatpush1.bf16.msra.mxu0 0
    %378 = vmatprep.subr.bf16.mxu0 0
    %379 = vmatpush1.bf16.msra.mxu0 0
    %380 = vmatprep.subr.bf16.mxu0 0
    %381 = vmatpush1.bf16.msra.mxu0 0
    %382 = vmatprep.mubr.bf16.mxu0 0
    %383 = vmatmul.mubr.bf16.gmra.mrb[0].mxu0 %v348
    %v384 = vpop.f32.mrb[0].mxu0
    %v385 = vadd.f32 0.0, %v384
    %v386 = vpop.f32.mrb[0].mxu0
    %v387 = vpop.f32.mrb[0].mxu0
    %v388 = vpop.f32.mrb[0].mxu0
    %389 = vdwg.mxu0
    %v390 = vadd.f32 %v346, %v385
    %s391 = scalar_lea.vmem [#allocation4], 18
    %v392 = vld [vmem:[%s391] sm:$0x3]
    %393 = vmatprep.subr.bf16.mxu0 0
    %394 = vmatpush1.bf16.msra.mxu0 %v154
    %395 = vmatprep.subr.bf16.mxu0 0
    %396 = vmatpush1.bf16.msra.mxu0 %v155
    %397 = vmatprep.subr.bf16.mxu0 0
    %398 = vmatpush1.bf16.msra.mxu0 0
    %399 = vmatprep.subr.bf16.mxu0 0
    %400 = vmatpush1.bf16.msra.mxu0 0
    %401 = vmatprep.subr.bf16.mxu0 0
    %402 = vmatpush1.bf16.msra.mxu0 0
    %403 = vmatprep.subr.bf16.mxu0 0
    %404 = vmatpush1.bf16.msra.mxu0 0
    %405 = vmatprep.subr.bf16.mxu0 0
    %406 = vmatpush1.bf16.msra.mxu0 0
    %407 = vmatprep.subr.bf16.mxu0 0
    %408 = vmatpush1.bf16.msra.mxu0 0
    %409 = vmatprep.subr.bf16.mxu0 0
    %410 = vmatpush1.bf16.msra.mxu0 0
    %411 = vmatprep.subr.bf16.mxu0 0
    %412 = vmatpush1.bf16.msra.mxu0 0
    %413 = vmatprep.subr.bf16.mxu0 0
    %414 = vmatpush1.bf16.msra.mxu0 0
    %415 = vmatprep.subr.bf16.mxu0 0
    %416 = vmatpush1.bf16.msra.mxu0 0
    %417 = vmatprep.subr.bf16.mxu0 0
    %418 = vmatpush1.bf16.msra.mxu0 0
    %419 = vmatprep.subr.bf16.mxu0 0
    %420 = vmatpush1.bf16.msra.mxu0 0
    %421 = vmatprep.subr.bf16.mxu0 0
    %422 = vmatpush1.bf16.msra.mxu0 0
    %423 = vmatprep.subr.bf16.mxu0 0
    %424 = vmatpush1.bf16.msra.mxu0 0
    %425 = vmatprep.mubr.bf16.mxu0 0
    %426 = vmatmul.mubr.bf16.gmra.mrb[0].mxu0 %v348
    %v427 = vpop.f32.mrb[0].mxu0
    %v428 = vadd.f32 0.0, %v427
    %v429 = vpop.f32.mrb[0].mxu0
    %v430 = vpop.f32.mrb[0].mxu0
    %v431 = vpop.f32.mrb[0].mxu0
    %432 = vdwg.mxu0
    %v433 = vadd.f32 %v392, %v428
    %s434 = scalar_lea.vmem [#allocation4], 34
    %v435 = vld [vmem:[%s434] sm:$0x3]
    %436 = vmatprep.subr.bf16.mxu0 0
    %437 = vmatpush1.bf16.msra.mxu0 %v209
    %438 = vmatprep.subr.bf16.mxu0 0
    %439 = vmatpush1.bf16.msra.mxu0 %v210
    %440 = vmatprep.subr.bf16.mxu0 0
    %441 = vmatpush1.bf16.msra.mxu0 0
    %442 = vmatprep.subr.bf16.mxu0 0
    %443 = vmatpush1.bf16.msra.mxu0 0
    %444 = vmatprep.subr.bf16.mxu0 0
    %445 = vmatpush1.bf16.msra.mxu0 0
    %446 = vmatprep.subr.bf16.mxu0 0
    %447 = vmatpush1.bf16.msra.mxu0 0
    %448 = vmatprep.subr.bf16.mxu0 0
    %449 = vmatpush1.bf16.msra.mxu0 0
    %450 = vmatprep.subr.bf16.mxu0 0
    %451 = vmatpush1.bf16.msra.mxu0 0
    %452 = vmatprep.subr.bf16.mxu0 0
    %453 = vmatpush1.bf16.msra.mxu0 0
    %454 = vmatprep.subr.bf16.mxu0 0
    %455 = vmatpush1.bf16.msra.mxu0 0
    %456 = vmatprep.subr.bf16.mxu0 0
    %457 = vmatpush1.bf16.msra.mxu0 0
    %458 = vmatprep.subr.bf16.mxu0 0
    %459 = vmatpush1.bf16.msra.mxu0 0
    %460 = vmatprep.subr.bf16.mxu0 0
    %461 = vmatpush1.bf16.msra.mxu0 0
    %462 = vmatprep.subr.bf16.mxu0 0
    %463 = vmatpush1.bf16.msra.mxu0 0
    %464 = vmatprep.subr.bf16.mxu0 0
    %465 = vmatpush1.bf16.msra.mxu0 0
    %466 = vmatprep.subr.bf16.mxu0 0
    %467 = vmatpush1.bf16.msra.mxu0 0
    %468 = vmatprep.mubr.bf16.mxu0 0
    %469 = vmatmul.mubr.bf16.gmra.mrb[0].mxu0 %v348
    %v470 = vpop.f32.mrb[0].mxu0
    %v471 = vadd.f32 0.0, %v470
    %v472 = vpop.f32.mrb[0].mxu0
    %v473 = vpop.f32.mrb[0].mxu0
    %v474 = vpop.f32.mrb[0].mxu0
    %475 = vdwg.mxu0
    %v476 = vadd.f32 %v435, %v471
    %s477 = scalar_lea.vmem [#allocation4], 50
    %v478 = vld [vmem:[%s477] sm:$0x3]
    %479 = vmatprep.subr.bf16.mxu0 0
    %480 = vmatpush1.bf16.msra.mxu0 %v264
    %481 = vmatprep.subr.bf16.mxu0 0
    %482 = vmatpush1.bf16.msra.mxu0 %v265
    %483 = vmatprep.subr.bf16.mxu0 0
    %484 = vmatpush1.bf16.msra.mxu0 0
    %485 = vmatprep.subr.bf16.mxu0 0
    %486 = vmatpush1.bf16.msra.mxu0 0
    %487 = vmatprep.subr.bf16.mxu0 0
    %488 = vmatpush1.bf16.msra.mxu0 0
    %489 = vmatprep.subr.bf16.mxu0 0
    %490 = vmatpush1.bf16.msra.mxu0 0
    %491 = vmatprep.subr.bf16.mxu0 0
    %492 = vmatpush1.bf16.msra.mxu0 0
    %493 = vmatprep.subr.bf16.mxu0 0
    %494 = vmatpush1.bf16.msra.mxu0 0
    %495 = vmatprep.subr.bf16.mxu0 0
    %496 = vmatpush1.bf16.msra.mxu0 0
    %497 = vmatprep.subr.bf16.mxu0 0
    %498 = vmatpush1.bf16.msra.mxu0 0
    %499 = vmatprep.subr.bf16.mxu0 0
    %500 = vmatpush1.bf16.msra.mxu0 0
    %501 = vmatprep.subr.bf16.mxu0 0
    %502 = vmatpush1.bf16.msra.mxu0 0
    %503 = vmatprep.subr.bf16.mxu0 0
    %504 = vmatpush1.bf16.msra.mxu0 0
    %505 = vmatprep.subr.bf16.mxu0 0
    %506 = vmatpush1.bf16.msra.mxu0 0
    %507 = vmatprep.subr.bf16.mxu0 0
    %508 = vmatpush1.bf16.msra.mxu0 0
    %509 = vmatprep.subr.bf16.mxu0 0
    %510 = vmatpush1.bf16.msra.mxu0 0
    %511 = vmatprep.mubr.bf16.mxu0 0
    %512 = vmatmul.mubr.bf16.gmra.mrb[0].mxu0 %v348
    %v513 = vpop.f32.mrb[0].mxu0
    %v514 = vadd.f32 0.0, %v513
    %v515 = vpop.f32.mrb[0].mxu0
    %v516 = vpop.f32.mrb[0].mxu0
    %v517 = vpop.f32.mrb[0].mxu0
    %518 = vdwg.mxu0
    %v519 = vadd.f32 %v478, %v514
    %v520 = vxor.u32 %v390, 2147483648
    %v521 = vmul.f32 %v520, 1.442695
    %v522 = vpow.pop %v521
    %v523 = vadd.f32 %v522, 1.0
    %v524 = vrcp.pop %v523
    %v525 = vmul.f32 1.0, %v524
    %v526 = vxor.u32 %v433, 2147483648
    %v527 = vmul.f32 %v526, 1.442695
    %v528 = vpow.pop %v527
    %v529 = vadd.f32 %v528, 1.0
    %v530 = vrcp.pop %v529
    %v531 = vmul.f32 1.0, %v530
    %v532 = vtanh.pop %v476
    %v533 = vxor.u32 %v519, 2147483648
    %v534 = vmul.f32 %v533, 1.442695
    %v535 = vpow.pop %v534
    %v536 = vadd.f32 %v535, 1.0
    %v537 = vrcp.pop %v536
    %v538 = vmul.f32 1.0, %v537
    %v539 = vmul.f32 %v531, %v343
    %v540 = vmul.f32 %v525, %v532
    %v541 = vadd.f32 %v539, %v540
    %v542 = vtanh.pop %v541
    %v543 = vmul.f32 %v538, %v542
    %s544 = scalar_lea.vmem [#allocation7], 2
    %v545 = vld [vmem:[%s544] sm:$0x3]
    %vm546 = vcmp.gt.f32.partialorder %v545, 0.0
    %v547 = vsel %vm546, %v541, %v343
    %548 = vst.msk [vmem:[#allocation3] sm:$0x3] %vm336, %v547
    %v549 = vsel %vm546, %v543, %v342
    %550 = vst.msk [vmem:[#allocation2] sm:$0x3] %vm336, %v549
    %v551 = vsel %vm546, %v543, 0.0
    %s552 = scalar_lea.vmem [#allocation10], 2
    %553 = vst.msk [vmem:[%s552] sm:$0x3] %vm336, %v551
    %v554 = vld [vmem:[#allocation2] sm:$0x3]
    %v555 = vld [vmem:[#allocation3] sm:$0x3]
    %v556 = vpack.c.bf16 %v554, %v554
    %s557 = scalar_lea.vmem [#allocation4], 4
    %v558 = vld [vmem:[%s557] sm:$0x3]
    %v560 = vsel %vm99, %v556, 0
    %562 = vmatprep.subr.bf16.mxu0 0
    %563 = vmatpush1.bf16.msra.mxu0 %v95
    %564 = vmatprep.subr.bf16.mxu0 0
    %565 = vmatpush1.bf16.msra.mxu0 %v96
    %566 = vmatprep.subr.bf16.mxu0 0
    %567 = vmatpush1.bf16.msra.mxu0 0
    %568 = vmatprep.subr.bf16.mxu0 0
    %569 = vmatpush1.bf16.msra.mxu0 0
    %570 = vmatprep.subr.bf16.mxu0 0
    %571 = vmatpush1.bf16.msra.mxu0 0
    %572 = vmatprep.subr.bf16.mxu0 0
    %573 = vmatpush1.bf16.msra.mxu0 0
    %574 = vmatprep.subr.bf16.mxu0 0
    %575 = vmatpush1.bf16.msra.mxu0 0
    %576 = vmatprep.subr.bf16.mxu0 0
    %577 = vmatpush1.bf16.msra.mxu0 0
    %578 = vmatprep.subr.bf16.mxu0 0
    %579 = vmatpush1.bf16.msra.mxu0 0
    %580 = vmatprep.subr.bf16.mxu0 0
    %581 = vmatpush1.bf16.msra.mxu0 0
    %582 = vmatprep.subr.bf16.mxu0 0
    %583 = vmatpush1.bf16.msra.mxu0 0
    %584 = vmatprep.subr.bf16.mxu0 0
    %585 = vmatpush1.bf16.msra.mxu0 0
    %586 = vmatprep.subr.bf16.mxu0 0
    %587 = vmatpush1.bf16.msra.mxu0 0
    %588 = vmatprep.subr.bf16.mxu0 0
    %589 = vmatpush1.bf16.msra.mxu0 0
    %590 = vmatprep.subr.bf16.mxu0 0
    %591 = vmatpush1.bf16.msra.mxu0 0
    %592 = vmatprep.subr.bf16.mxu0 0
    %593 = vmatpush1.bf16.msra.mxu0 0
    %594 = vmatprep.mubr.bf16.mxu0 0
    %595 = vmatmul.mubr.bf16.gmra.mrb[0].mxu0 %v560
    %v596 = vpop.f32.mrb[0].mxu0
    %v597 = vadd.f32 0.0, %v596
    %v598 = vpop.f32.mrb[0].mxu0
    %v599 = vpop.f32.mrb[0].mxu0
    %v600 = vpop.f32.mrb[0].mxu0
    %601 = vdwg.mxu0
    %v602 = vadd.f32 %v558, %v597
    %s603 = scalar_lea.vmem [#allocation4], 20
    %v604 = vld [vmem:[%s603] sm:$0x3]
    %605 = vmatprep.subr.bf16.mxu0 0
    %606 = vmatpush1.bf16.msra.mxu0 %v154
    %607 = vmatprep.subr.bf16.mxu0 0
    %608 = vmatpush1.bf16.msra.mxu0 %v155
    %609 = vmatprep.subr.bf16.mxu0 0
    %610 = vmatpush1.bf16.msra.mxu0 0
    %611 = vmatprep.subr.bf16.mxu0 0
    %612 = vmatpush1.bf16.msra.mxu0 0
    %613 = vmatprep.subr.bf16.mxu0 0
    %614 = vmatpush1.bf16.msra.mxu0 0
    %615 = vmatprep.subr.bf16.mxu0 0
    %616 = vmatpush1.bf16.msra.mxu0 0
    %617 = vmatprep.subr.bf16.mxu0 0
    %618 = vmatpush1.bf16.msra.mxu0 0
    %619 = vmatprep.subr.bf16.mxu0 0
    %620 = vmatpush1.bf16.msra.mxu0 0
    %621 = vmatprep.subr.bf16.mxu0 0
    %622 = vmatpush1.bf16.msra.mxu0 0
    %623 = vmatprep.subr.bf16.mxu0 0
    %624 = vmatpush1.bf16.msra.mxu0 0
    %625 = vmatprep.subr.bf16.mxu0 0
    %626 = vmatpush1.bf16.msra.mxu0 0
    %627 = vmatprep.subr.bf16.mxu0 0
    %628 = vmatpush1.bf16.msra.mxu0 0
    %629 = vmatprep.subr.bf16.mxu0 0
    %630 = vmatpush1.bf16.msra.mxu0 0
    %631 = vmatprep.subr.bf16.mxu0 0
    %632 = vmatpush1.bf16.msra.mxu0 0
    %633 = vmatprep.subr.bf16.mxu0 0
    %634 = vmatpush1.bf16.msra.mxu0 0
    %635 = vmatprep.subr.bf16.mxu0 0
    %636 = vmatpush1.bf16.msra.mxu0 0
    %637 = vmatprep.mubr.bf16.mxu0 0
    %638 = vmatmul.mubr.bf16.gmra.mrb[0].mxu0 %v560
    %v639 = vpop.f32.mrb[0].mxu0
    %v640 = vadd.f32 0.0, %v639
    %v641 = vpop.f32.mrb[0].mxu0
    %v642 = vpop.f32.mrb[0].mxu0
    %v643 = vpop.f32.mrb[0].mxu0
    %644 = vdwg.mxu0
    %v645 = vadd.f32 %v604, %v640
    %s646 = scalar_lea.vmem [#allocation4], 36
    %v647 = vld [vmem:[%s646] sm:$0x3]
    %648 = vmatprep.subr.bf16.mxu0 0
    %649 = vmatpush1.bf16.msra.mxu0 %v209
    %650 = vmatprep.subr.bf16.mxu0 0
    %651 = vmatpush1.bf16.msra.mxu0 %v210
    %652 = vmatprep.subr.bf16.mxu0 0
    %653 = vmatpush1.bf16.msra.mxu0 0
    %654 = vmatprep.subr.bf16.mxu0 0
    %655 = vmatpush1.bf16.msra.mxu0 0
    %656 = vmatprep.subr.bf16.mxu0 0
    %657 = vmatpush1.bf16.msra.mxu0 0
    %658 = vmatprep.subr.bf16.mxu0 0
    %659 = vmatpush1.bf16.msra.mxu0 0
    %660 = vmatprep.subr.bf16.mxu0 0
    %661 = vmatpush1.bf16.msra.mxu0 0
    %662 = vmatprep.subr.bf16.mxu0 0
    %663 = vmatpush1.bf16.msra.mxu0 0
    %664 = vmatprep.subr.bf16.mxu0 0
    %665 = vmatpush1.bf16.msra.mxu0 0
    %666 = vmatprep.subr.bf16.mxu0 0
    %667 = vmatpush1.bf16.msra.mxu0 0
    %668 = vmatprep.subr.bf16.mxu0 0
    %669 = vmatpush1.bf16.msra.mxu0 0
    %670 = vmatprep.subr.bf16.mxu0 0
    %671 = vmatpush1.bf16.msra.mxu0 0
    %672 = vmatprep.subr.bf16.mxu0 0
    %673 = vmatpush1.bf16.msra.mxu0 0
    %674 = vmatprep.subr.bf16.mxu0 0
    %675 = vmatpush1.bf16.msra.mxu0 0
    %676 = vmatprep.subr.bf16.mxu0 0
    %677 = vmatpush1.bf16.msra.mxu0 0
    %678 = vmatprep.subr.bf16.mxu0 0
    %679 = vmatpush1.bf16.msra.mxu0 0
    %680 = vmatprep.mubr.bf16.mxu0 0
    %681 = vmatmul.mubr.bf16.gmra.mrb[0].mxu0 %v560
    %v682 = vpop.f32.mrb[0].mxu0
    %v683 = vadd.f32 0.0, %v682
    %v684 = vpop.f32.mrb[0].mxu0
    %v685 = vpop.f32.mrb[0].mxu0
    %v686 = vpop.f32.mrb[0].mxu0
    %687 = vdwg.mxu0
    %v688 = vadd.f32 %v647, %v683
    %s689 = scalar_lea.vmem [#allocation4], 52
    %v690 = vld [vmem:[%s689] sm:$0x3]
    %691 = vmatprep.subr.bf16.mxu0 0
    %692 = vmatpush1.bf16.msra.mxu0 %v264
    %693 = vmatprep.subr.bf16.mxu0 0
    %694 = vmatpush1.bf16.msra.mxu0 %v265
    %695 = vmatprep.subr.bf16.mxu0 0
    %696 = vmatpush1.bf16.msra.mxu0 0
    %697 = vmatprep.subr.bf16.mxu0 0
    %698 = vmatpush1.bf16.msra.mxu0 0
    %699 = vmatprep.subr.bf16.mxu0 0
    %700 = vmatpush1.bf16.msra.mxu0 0
    %701 = vmatprep.subr.bf16.mxu0 0
    %702 = vmatpush1.bf16.msra.mxu0 0
    %703 = vmatprep.subr.bf16.mxu0 0
    %704 = vmatpush1.bf16.msra.mxu0 0
    %705 = vmatprep.subr.bf16.mxu0 0
    %706 = vmatpush1.bf16.msra.mxu0 0
    %707 = vmatprep.subr.bf16.mxu0 0
    %708 = vmatpush1.bf16.msra.mxu0 0
    %709 = vmatprep.subr.bf16.mxu0 0
    %710 = vmatpush1.bf16.msra.mxu0 0
    %711 = vmatprep.subr.bf16.mxu0 0
    %712 = vmatpush1.bf16.msra.mxu0 0
    %713 = vmatprep.subr.bf16.mxu0 0
    %714 = vmatpush1.bf16.msra.mxu0 0
    %715 = vmatprep.subr.bf16.mxu0 0
    %716 = vmatpush1.bf16.msra.mxu0 0
    %717 = vmatprep.subr.bf16.mxu0 0
    %718 = vmatpush1.bf16.msra.mxu0 0
    %719 = vmatprep.subr.bf16.mxu0 0
    %720 = vmatpush1.bf16.msra.mxu0 0
    %721 = vmatprep.subr.bf16.mxu0 0
    %722 = vmatpush1.bf16.msra.mxu0 0
    %723 = vmatprep.mubr.bf16.mxu0 0
    %724 = vmatmul.mubr.bf16.gmra.mrb[0].mxu0 %v560
    %v725 = vpop.f32.mrb[0].mxu0
    %v726 = vadd.f32 0.0, %v725
    %v727 = vpop.f32.mrb[0].mxu0
    %v728 = vpop.f32.mrb[0].mxu0
    %v729 = vpop.f32.mrb[0].mxu0
    %730 = vdwg.mxu0
    %v731 = vadd.f32 %v690, %v726
    %v732 = vxor.u32 %v602, 2147483648
    %v733 = vmul.f32 %v732, 1.442695
    %v734 = vpow.pop %v733
    %v735 = vadd.f32 %v734, 1.0
    %v736 = vrcp.pop %v735
    %v737 = vmul.f32 1.0, %v736
    %v738 = vxor.u32 %v645, 2147483648
    %v739 = vmul.f32 %v738, 1.442695
    %v740 = vpow.pop %v739
    %v741 = vadd.f32 %v740, 1.0
    %v742 = vrcp.pop %v741
    %v743 = vmul.f32 1.0, %v742
    %v744 = vtanh.pop %v688
    %v745 = vxor.u32 %v731, 2147483648
    %v746 = vmul.f32 %v745, 1.442695
    %v747 = vpow.pop %v746
    %v748 = vadd.f32 %v747, 1.0
    %v749 = vrcp.pop %v748
    %v750 = vmul.f32 1.0, %v749
    %v751 = vmul.f32 %v743, %v555
    %v752 = vmul.f32 %v737, %v744
    %v753 = vadd.f32 %v751, %v752
    %v754 = vtanh.pop %v753
    %v755 = vmul.f32 %v750, %v754
    %s756 = scalar_lea.vmem [#allocation7], 4
    %v757 = vld [vmem:[%s756] sm:$0x3]
    %vm758 = vcmp.gt.f32.partialorder %v757, 0.0
    %v759 = vsel %vm758, %v753, %v555
    %760 = vst.msk [vmem:[#allocation3] sm:$0x3] %vm336, %v759
    %v761 = vsel %vm758, %v755, %v554
    %762 = vst.msk [vmem:[#allocation2] sm:$0x3] %vm336, %v761
    %v763 = vsel %vm758, %v755, 0.0
    %s764 = scalar_lea.vmem [#allocation10], 4
    %765 = vst.msk [vmem:[%s764] sm:$0x3] %vm336, %v763
    %v766 = vld [vmem:[#allocation2] sm:$0x3]
    %v767 = vld [vmem:[#allocation3] sm:$0x3]
    %v768 = vpack.c.bf16 %v766, %v766
    %s769 = scalar_lea.vmem [#allocation4], 6
    %v770 = vld [vmem:[%s769] sm:$0x3]
    %v772 = vsel %vm99, %v768, 0
    %774 = vmatprep.subr.bf16.mxu0 0
    %775 = vmatpush1.bf16.msra.mxu0 %v95
    %776 = vmatprep.subr.bf16.mxu0 0
    %777 = vmatpush1.bf16.msra.mxu0 %v96
    %778 = vmatprep.subr.bf16.mxu0 0
    %779 = vmatpush1.bf16.msra.mxu0 0
    %780 = vmatprep.subr.bf16.mxu0 0
    %781 = vmatpush1.bf16.msra.mxu0 0
    %782 = vmatprep.subr.bf16.mxu0 0
    %783 = vmatpush1.bf16.msra.mxu0 0
    %784 = vmatprep.subr.bf16.mxu0 0
    %785 = vmatpush1.bf16.msra.mxu0 0
    %786 = vmatprep.subr.bf16.mxu0 0
    %787 = vmatpush1.bf16.msra.mxu0 0
    %788 = vmatprep.subr.bf16.mxu0 0
    %789 = vmatpush1.bf16.msra.mxu0 0
    %790 = vmatprep.subr.bf16.mxu0 0
    %791 = vmatpush1.bf16.msra.mxu0 0
    %792 = vmatprep.subr.bf16.mxu0 0
    %793 = vmatpush1.bf16.msra.mxu0 0
    %794 = vmatprep.subr.bf16.mxu0 0
    %795 = vmatpush1.bf16.msra.mxu0 0
    %796 = vmatprep.subr.bf16.mxu0 0
    %797 = vmatpush1.bf16.msra.mxu0 0
    %798 = vmatprep.subr.bf16.mxu0 0
    %799 = vmatpush1.bf16.msra.mxu0 0
    %800 = vmatprep.subr.bf16.mxu0 0
    %801 = vmatpush1.bf16.msra.mxu0 0
    %802 = vmatprep.subr.bf16.mxu0 0
    %803 = vmatpush1.bf16.msra.mxu0 0
    %804 = vmatprep.subr.bf16.mxu0 0
    %805 = vmatpush1.bf16.msra.mxu0 0
    %806 = vmatprep.mubr.bf16.mxu0 0
    %807 = vmatmul.mubr.bf16.gmra.mrb[0].mxu0 %v772
    %v808 = vpop.f32.mrb[0].mxu0
    %v809 = vadd.f32 0.0, %v808
    %v810 = vpop.f32.mrb[0].mxu0
    %v811 = vpop.f32.mrb[0].mxu0
    %v812 = vpop.f32.mrb[0].mxu0
    %813 = vdwg.mxu0
    %v814 = vadd.f32 %v770, %v809
    %s815 = scalar_lea.vmem [#allocation4], 22
    %v816 = vld [vmem:[%s815] sm:$0x3]
    %817 = vmatprep.subr.bf16.mxu0 0
    %818 = vmatpush1.bf16.msra.mxu0 %v154
    %819 = vmatprep.subr.bf16.mxu0 0
    %820 = vmatpush1.bf16.msra.mxu0 %v155
    %821 = vmatprep.subr.bf16.mxu0 0
    %822 = vmatpush1.bf16.msra.mxu0 0
    %823 = vmatprep.subr.bf16.mxu0 0
    %824 = vmatpush1.bf16.msra.mxu0 0
    %825 = vmatprep.subr.bf16.mxu0 0
    %826 = vmatpush1.bf16.msra.mxu0 0
    %827 = vmatprep.subr.bf16.mxu0 0
    %828 = vmatpush1.bf16.msra.mxu0 0
    %829 = vmatprep.subr.bf16.mxu0 0
    %830 = vmatpush1.bf16.msra.mxu0 0
    %831 = vmatprep.subr.bf16.mxu0 0
    %832 = vmatpush1.bf16.msra.mxu0 0
    %833 = vmatprep.subr.bf16.mxu0 0
    %834 = vmatpush1.bf16.msra.mxu0 0
    %835 = vmatprep.subr.bf16.mxu0 0
    %836 = vmatpush1.bf16.msra.mxu0 0
    %837 = vmatprep.subr.bf16.mxu0 0
    %838 = vmatpush1.bf16.msra.mxu0 0
    %839 = vmatprep.subr.bf16.mxu0 0
    %840 = vmatpush1.bf16.msra.mxu0 0
    %841 = vmatprep.subr.bf16.mxu0 0
    %842 = vmatpush1.bf16.msra.mxu0 0
    %843 = vmatprep.subr.bf16.mxu0 0
    %844 = vmatpush1.bf16.msra.mxu0 0
    %845 = vmatprep.subr.bf16.mxu0 0
    %846 = vmatpush1.bf16.msra.mxu0 0
    %847 = vmatprep.subr.bf16.mxu0 0
    %848 = vmatpush1.bf16.msra.mxu0 0
    %849 = vmatprep.mubr.bf16.mxu0 0
    %850 = vmatmul.mubr.bf16.gmra.mrb[0].mxu0 %v772
    %v851 = vpop.f32.mrb[0].mxu0
    %v852 = vadd.f32 0.0, %v851
    %v853 = vpop.f32.mrb[0].mxu0
    %v854 = vpop.f32.mrb[0].mxu0
    %v855 = vpop.f32.mrb[0].mxu0
    %856 = vdwg.mxu0
    %v857 = vadd.f32 %v816, %v852
    %s858 = scalar_lea.vmem [#allocation4], 38
    %v859 = vld [vmem:[%s858] sm:$0x3]
    %860 = vmatprep.subr.bf16.mxu0 0
    %861 = vmatpush1.bf16.msra.mxu0 %v209
    %862 = vmatprep.subr.bf16.mxu0 0
    %863 = vmatpush1.bf16.msra.mxu0 %v210
    %864 = vmatprep.subr.bf16.mxu0 0
    %865 = vmatpush1.bf16.msra.mxu0 0
    %866 = vmatprep.subr.bf16.mxu0 0
    %867 = vmatpush1.bf16.msra.mxu0 0
    %868 = vmatprep.subr.bf16.mxu0 0
    %869 = vmatpush1.bf16.msra.mxu0 0
    %870 = vmatprep.subr.bf16.mxu0 0
    %871 = vmatpush1.bf16.msra.mxu0 0
    %872 = vmatprep.subr.bf16.mxu0 0
    %873 = vmatpush1.bf16.msra.mxu0 0
    %874 = vmatprep.subr.bf16.mxu0 0
    %875 = vmatpush1.bf16.msra.mxu0 0
    %876 = vmatprep.subr.bf16.mxu0 0
    %877 = vmatpush1.bf16.msra.mxu0 0
    %878 = vmatprep.subr.bf16.mxu0 0
    %879 = vmatpush1.bf16.msra.mxu0 0
    %880 = vmatprep.subr.bf16.mxu0 0
    %881 = vmatpush1.bf16.msra.mxu0 0
    %882 = vmatprep.subr.bf16.mxu0 0
    %883 = vmatpush1.bf16.msra.mxu0 0
    %884 = vmatprep.subr.bf16.mxu0 0
    %885 = vmatpush1.bf16.msra.mxu0 0
    %886 = vmatprep.subr.bf16.mxu0 0
    %887 = vmatpush1.bf16.msra.mxu0 0
    %888 = vmatprep.subr.bf16.mxu0 0
    %889 = vmatpush1.bf16.msra.mxu0 0
    %890 = vmatprep.subr.bf16.mxu0 0
    %891 = vmatpush1.bf16.msra.mxu0 0
    %892 = vmatprep.mubr.bf16.mxu0 0
    %893 = vmatmul.mubr.bf16.gmra.mrb[0].mxu0 %v772
    %v894 = vpop.f32.mrb[0].mxu0
    %v895 = vadd.f32 0.0, %v894
    %v896 = vpop.f32.mrb[0].mxu0
    %v897 = vpop.f32.mrb[0].mxu0
    %v898 = vpop.f32.mrb[0].mxu0
    %899 = vdwg.mxu0
    %v900 = vadd.f32 %v859, %v895
    %s901 = scalar_lea.vmem [#allocation4], 54
    %v902 = vld [vmem:[%s901] sm:$0x3]
    %903 = vmatprep.subr.bf16.mxu0 0
    %904 = vmatpush1.bf16.msra.mxu0 %v264
    %905 = vmatprep.subr.bf16.mxu0 0
    %906 = vmatpush1.bf16.msra.mxu0 %v265
    %907 = vmatprep.subr.bf16.mxu0 0
    %908 = vmatpush1.bf16.msra.mxu0 0
    %909 = vmatprep.subr.bf16.mxu0 0
    %910 = vmatpush1.bf16.msra.mxu0 0
    %911 = vmatprep.subr.bf16.mxu0 0
    %912 = vmatpush1.bf16.msra.mxu0 0
    %913 = vmatprep.subr.bf16.mxu0 0
    %914 = vmatpush1.bf16.msra.mxu0 0
    %915 = vmatprep.subr.bf16.mxu0 0
    %916 = vmatpush1.bf16.msra.mxu0 0
    %917 = vmatprep.subr.bf16.mxu0 0
    %918 = vmatpush1.bf16.msra.mxu0 0
    %919 = vmatprep.subr.bf16.mxu0 0
    %920 = vmatpush1.bf16.msra.mxu0 0
    %921 = vmatprep.subr.bf16.mxu0 0
    %922 = vmatpush1.bf16.msra.mxu0 0
    %923 = vmatprep.subr.bf16.mxu0 0
    %924 = vmatpush1.bf16.msra.mxu0 0
    %925 = vmatprep.subr.bf16.mxu0 0
    %926 = vmatpush1.bf16.msra.mxu0 0
    %927 = vmatprep.subr.bf16.mxu0 0
    %928 = vmatpush1.bf16.msra.mxu0 0
    %929 = vmatprep.subr.bf16.mxu0 0
    %930 = vmatpush1.bf16.msra.mxu0 0
    %931 = vmatprep.subr.bf16.mxu0 0
    %932 = vmatpush1.bf16.msra.mxu0 0
    %933 = vmatprep.subr.bf16.mxu0 0
    %934 = vmatpush1.bf16.msra.mxu0 0
    %935 = vmatprep.mubr.bf16.mxu0 0
    %936 = vmatmul.mubr.bf16.gmra.mrb[0].mxu0 %v772
    %v937 = vpop.f32.mrb[0].mxu0
    %v938 = vadd.f32 0.0, %v937
    %v939 = vpop.f32.mrb[0].mxu0
    %v940 = vpop.f32.mrb[0].mxu0
    %v941 = vpop.f32.mrb[0].mxu0
    %942 = vdwg.mxu0
    %v943 = vadd.f32 %v902, %v938
    %v944 = vxor.u32 %v814, 2147483648
    %v945 = vmul.f32 %v944, 1.442695
    %v946 = vpow.pop %v945
    %v947 = vadd.f32 %v946, 1.0
    %v948 = vrcp.pop %v947
    %v949 = vmul.f32 1.0, %v948
    %v950 = vxor.u32 %v857, 2147483648
    %v951 = vmul.f32 %v950, 1.442695
    %v952 = vpow.pop %v951
    %v953 = vadd.f32 %v952, 1.0
    %v954 = vrcp.pop %v953
    %v955 = vmul.f32 1.0, %v954
    %v956 = vtanh.pop %v900
    %v957 = vxor.u32 %v943, 2147483648
    %v958 = vmul.f32 %v957, 1.442695
    %v959 = vpow.pop %v958
    %v960 = vadd.f32 %v959, 1.0
    %v961 = vrcp.pop %v960
    %v962 = vmul.f32 1.0, %v961
    %v963 = vmul.f32 %v955, %v767
    %v964 = vmul.f32 %v949, %v956
    %v965 = vadd.f32 %v963, %v964
    %v966 = vtanh.pop %v965
    %v967 = vmul.f32 %v962, %v966
    %s968 = scalar_lea.vmem [#allocation7], 6
    %v969 = vld [vmem:[%s968] sm:$0x3]
    %vm970 = vcmp.gt.f32.partialorder %v969, 0.0
    %v971 = vsel %vm970, %v965, %v767
    %972 = vst.msk [vmem:[#allocation3] sm:$0x3] %vm336, %v971
    %v973 = vsel %vm970, %v967, %v766
    %974 = vst.msk [vmem:[#allocation2] sm:$0x3] %vm336, %v973
    %v975 = vsel %vm970, %v967, 0.0
    %s976 = scalar_lea.vmem [#allocation10], 6
    %977 = vst.msk [vmem:[%s976] sm:$0x3] %vm336, %v975
    %v978 = vld [vmem:[#allocation2] sm:$0x3]
    %v979 = vld [vmem:[#allocation3] sm:$0x3]
    %v980 = vpack.c.bf16 %v978, %v978
    %s981 = scalar_lea.vmem [#allocation4], 8
    %v982 = vld [vmem:[%s981] sm:$0x3]
    %v984 = vsel %vm99, %v980, 0
    %986 = vmatprep.subr.bf16.mxu0 0
    %987 = vmatpush1.bf16.msra.mxu0 %v95
    %988 = vmatprep.subr.bf16.mxu0 0
    %989 = vmatpush1.bf16.msra.mxu0 %v96
    %990 = vmatprep.subr.bf16.mxu0 0
    %991 = vmatpush1.bf16.msra.mxu0 0
    %992 = vmatprep.subr.bf16.mxu0 0
    %993 = vmatpush1.bf16.msra.mxu0 0
    %994 = vmatprep.subr.bf16.mxu0 0
    %995 = vmatpush1.bf16.msra.mxu0 0
    %996 = vmatprep.subr.bf16.mxu0 0
    %997 = vmatpush1.bf16.msra.mxu0 0
    %998 = vmatprep.subr.bf16.mxu0 0
    %999 = vmatpush1.bf16.msra.mxu0 0
    %1000 = vmatprep.subr.bf16.mxu0 0
    %1001 = vmatpush1.bf16.msra.mxu0 0
    %1002 = vmatprep.subr.bf16.mxu0 0
    %1003 = vmatpush1.bf16.msra.mxu0 0
    %1004 = vmatprep.subr.bf16.mxu0 0
    %1005 = vmatpush1.bf16.msra.mxu0 0
    %1006 = vmatprep.subr.bf16.mxu0 0
    %1007 = vmatpush1.bf16.msra.mxu0 0
    %1008 = vmatprep.subr.bf16.mxu0 0
    %1009 = vmatpush1.bf16.msra.mxu0 0
    %1010 = vmatprep.subr.bf16.mxu0 0
    %1011 = vmatpush1.bf16.msra.mxu0 0
    %1012 = vmatprep.subr.bf16.mxu0 0
    %1013 = vmatpush1.bf16.msra.mxu0 0
    %1014 = vmatprep.subr.bf16.mxu0 0
    %1015 = vmatpush1.bf16.msra.mxu0 0
    %1016 = vmatprep.subr.bf16.mxu0 0
    %1017 = vmatpush1.bf16.msra.mxu0 0
    %1018 = vmatprep.mubr.bf16.mxu0 0
    %1019 = vmatmul.mubr.bf16.gmra.mrb[0].mxu0 %v984
    %v1020 = vpop.f32.mrb[0].mxu0
    %v1021 = vadd.f32 0.0, %v1020
    %v1022 = vpop.f32.mrb[0].mxu0
    %v1023 = vpop.f32.mrb[0].mxu0
    %v1024 = vpop.f32.mrb[0].mxu0
    %1025 = vdwg.mxu0
    %v1026 = vadd.f32 %v982, %v1021
    %s1027 = scalar_lea.vmem [#allocation4], 24
    %v1028 = vld [vmem:[%s1027] sm:$0x3]
    %1029 = vmatprep.subr.bf16.mxu0 0
    %1030 = vmatpush1.bf16.msra.mxu0 %v154
    %1031 = vmatprep.subr.bf16.mxu0 0
    %1032 = vmatpush1.bf16.msra.mxu0 %v155
    %1033 = vmatprep.subr.bf16.mxu0 0
    %1034 = vmatpush1.bf16.msra.mxu0 0
    %1035 = vmatprep.subr.bf16.mxu0 0
    %1036 = vmatpush1.bf16.msra.mxu0 0
    %1037 = vmatprep.subr.bf16.mxu0 0
    %1038 = vmatpush1.bf16.msra.mxu0 0
    %1039 = vmatprep.subr.bf16.mxu0 0
    %1040 = vmatpush1.bf16.msra.mxu0 0
    %1041 = vmatprep.subr.bf16.mxu0 0
    %1042 = vmatpush1.bf16.msra.mxu0 0
    %1043 = vmatprep.subr.bf16.mxu0 0
    %1044 = vmatpush1.bf16.msra.mxu0 0
    %1045 = vmatprep.subr.bf16.mxu0 0
    %1046 = vmatpush1.bf16.msra.mxu0 0
    %1047 = vmatprep.subr.bf16.mxu0 0
    %1048 = vmatpush1.bf16.msra.mxu0 0
    %1049 = vmatprep.subr.bf16.mxu0 0
    %1050 = vmatpush1.bf16.msra.mxu0 0
    %1051 = vmatprep.subr.bf16.mxu0 0
    %1052 = vmatpush1.bf16.msra.mxu0 0
    %1053 = vmatprep.subr.bf16.mxu0 0
    %1054 = vmatpush1.bf16.msra.mxu0 0
    %1055 = vmatprep.subr.bf16.mxu0 0
    %1056 = vmatpush1.bf16.msra.mxu0 0
    %1057 = vmatprep.subr.bf16.mxu0 0
    %1058 = vmatpush1.bf16.msra.mxu0 0
    %1059 = vmatprep.subr.bf16.mxu0 0
    %1060 = vmatpush1.bf16.msra.mxu0 0
    %1061 = vmatprep.mubr.bf16.mxu0 0
    %1062 = vmatmul.mubr.bf16.gmra.mrb[0].mxu0 %v984
    %v1063 = vpop.f32.mrb[0].mxu0
    %v1064 = vadd.f32 0.0, %v1063
    %v1065 = vpop.f32.mrb[0].mxu0
    %v1066 = vpop.f32.mrb[0].mxu0
    %v1067 = vpop.f32.mrb[0].mxu0
    %1068 = vdwg.mxu0
    %v1069 = vadd.f32 %v1028, %v1064
    %s1070 = scalar_lea.vmem [#allocation4], 40
    %v1071 = vld [vmem:[%s1070] sm:$0x3]
    %1072 = vmatprep.subr.bf16.mxu0 0
    %1073 = vmatpush1.bf16.msra.mxu0 %v209
    %1074 = vmatprep.subr.bf16.mxu0 0
    %1075 = vmatpush1.bf16.msra.mxu0 %v210
    %1076 = vmatprep.subr.bf16.mxu0 0
    %1077 = vmatpush1.bf16.msra.mxu0 0
    %1078 = vmatprep.subr.bf16.mxu0 0
    %1079 = vmatpush1.bf16.msra.mxu0 0
    %1080 = vmatprep.subr.bf16.mxu0 0
    %1081 = vmatpush1.bf16.msra.mxu0 0
    %1082 = vmatprep.subr.bf16.mxu0 0
    %1083 = vmatpush1.bf16.msra.mxu0 0
    %1084 = vmatprep.subr.bf16.mxu0 0
    %1085 = vmatpush1.bf16.msra.mxu0 0
    %1086 = vmatprep.subr.bf16.mxu0 0
    %1087 = vmatpush1.bf16.msra.mxu0 0
    %1088 = vmatprep.subr.bf16.mxu0 0
    %1089 = vmatpush1.bf16.msra.mxu0 0
    %1090 = vmatprep.subr.bf16.mxu0 0
    %1091 = vmatpush1.bf16.msra.mxu0 0
    %1092 = vmatprep.subr.bf16.mxu0 0
    %1093 = vmatpush1.bf16.msra.mxu0 0
    %1094 = vmatprep.subr.bf16.mxu0 0
    %1095 = vmatpush1.bf16.msra.mxu0 0
    %1096 = vmatprep.subr.bf16.mxu0 0
    %1097 = vmatpush1.bf16.msra.mxu0 0
    %1098 = vmatprep.subr.bf16.mxu0 0
    %1099 = vmatpush1.bf16.msra.mxu0 0
    %1100 = vmatprep.subr.bf16.mxu0 0
    %1101 = vmatpush1.bf16.msra.mxu0 0
    %1102 = vmatprep.subr.bf16.mxu0 0
    %1103 = vmatpush1.bf16.msra.mxu0 0
    %1104 = vmatprep.mubr.bf16.mxu0 0
    %1105 = vmatmul.mubr.bf16.gmra.mrb[0].mxu0 %v984
    %v1106 = vpop.f32.mrb[0].mxu0
    %v1107 = vadd.f32 0.0, %v1106
    %v1108 = vpop.f32.mrb[0].mxu0
    %v1109 = vpop.f32.mrb[0].mxu0
    %v1110 = vpop.f32.mrb[0].mxu0
    %1111 = vdwg.mxu0
    %v1112 = vadd.f32 %v1071, %v1107
    %s1113 = scalar_lea.vmem [#allocation4], 56
    %v1114 = vld [vmem:[%s1113] sm:$0x3]
    %1115 = vmatprep.subr.bf16.mxu0 0
    %1116 = vmatpush1.bf16.msra.mxu0 %v264
    %1117 = vmatprep.subr.bf16.mxu0 0
    %1118 = vmatpush1.bf16.msra.mxu0 %v265
    %1119 = vmatprep.subr.bf16.mxu0 0
    %1120 = vmatpush1.bf16.msra.mxu0 0
    %1121 = vmatprep.subr.bf16.mxu0 0
    %1122 = vmatpush1.bf16.msra.mxu0 0
    %1123 = vmatprep.subr.bf16.mxu0 0
    %1124 = vmatpush1.bf16.msra.mxu0 0
    %1125 = vmatprep.subr.bf16.mxu0 0
    %1126 = vmatpush1.bf16.msra.mxu0 0
    %1127 = vmatprep.subr.bf16.mxu0 0
    %1128 = vmatpush1.bf16.msra.mxu0 0
    %1129 = vmatprep.subr.bf16.mxu0 0
    %1130 = vmatpush1.bf16.msra.mxu0 0
    %1131 = vmatprep.subr.bf16.mxu0 0
    %1132 = vmatpush1.bf16.msra.mxu0 0
    %1133 = vmatprep.subr.bf16.mxu0 0
    %1134 = vmatpush1.bf16.msra.mxu0 0
    %1135 = vmatprep.subr.bf16.mxu0 0
    %1136 = vmatpush1.bf16.msra.mxu0 0
    %1137 = vmatprep.subr.bf16.mxu0 0
    %1138 = vmatpush1.bf16.msra.mxu0 0
    %1139 = vmatprep.subr.bf16.mxu0 0
    %1140 = vmatpush1.bf16.msra.mxu0 0
    %1141 = vmatprep.subr.bf16.mxu0 0
    %1142 = vmatpush1.bf16.msra.mxu0 0
    %1143 = vmatprep.subr.bf16.mxu0 0
    %1144 = vmatpush1.bf16.msra.mxu0 0
    %1145 = vmatprep.subr.bf16.mxu0 0
    %1146 = vmatpush1.bf16.msra.mxu0 0
    %1147 = vmatprep.mubr.bf16.mxu0 0
    %1148 = vmatmul.mubr.bf16.gmra.mrb[0].mxu0 %v984
    %v1149 = vpop.f32.mrb[0].mxu0
    %v1150 = vadd.f32 0.0, %v1149
    %v1151 = vpop.f32.mrb[0].mxu0
    %v1152 = vpop.f32.mrb[0].mxu0
    %v1153 = vpop.f32.mrb[0].mxu0
    %1154 = vdwg.mxu0
    %v1155 = vadd.f32 %v1114, %v1150
    %v1156 = vxor.u32 %v1026, 2147483648
    %v1157 = vmul.f32 %v1156, 1.442695
    %v1158 = vpow.pop %v1157
    %v1159 = vadd.f32 %v1158, 1.0
    %v1160 = vrcp.pop %v1159
    %v1161 = vmul.f32 1.0, %v1160
    %v1162 = vxor.u32 %v1069, 2147483648
    %v1163 = vmul.f32 %v1162, 1.442695
    %v1164 = vpow.pop %v1163
    %v1165 = vadd.f32 %v1164, 1.0
    %v1166 = vrcp.pop %v1165
    %v1167 = vmul.f32 1.0, %v1166
    %v1168 = vtanh.pop %v1112
    %v1169 = vxor.u32 %v1155, 2147483648
    %v1170 = vmul.f32 %v1169, 1.442695
    %v1171 = vpow.pop %v1170
    %v1172 = vadd.f32 %v1171, 1.0
    %v1173 = vrcp.pop %v1172
    %v1174 = vmul.f32 1.0, %v1173
    %v1175 = vmul.f32 %v1167, %v979
    %v1176 = vmul.f32 %v1161, %v1168
    %v1177 = vadd.f32 %v1175, %v1176
    %v1178 = vtanh.pop %v1177
    %v1179 = vmul.f32 %v1174, %v1178
    %s1180 = scalar_lea.vmem [#allocation7], 8
    %v1181 = vld [vmem:[%s1180] sm:$0x3]
    %vm1182 = vcmp.gt.f32.partialorder %v1181, 0.0
    %v1183 = vsel %vm1182, %v1177, %v979
    %1184 = vst.msk [vmem:[#allocation3] sm:$0x3] %vm336, %v1183
    %v1185 = vsel %vm1182, %v1179, %v978
    %1186 = vst.msk [vmem:[#allocation2] sm:$0x3] %vm336, %v1185
    %v1187 = vsel %vm1182, %v1179, 0.0
    %s1188 = scalar_lea.vmem [#allocation10], 8
    %1189 = vst.msk [vmem:[%s1188] sm:$0x3] %vm336, %v1187
    %v1190 = vld [vmem:[#allocation2] sm:$0x3]
    %v1191 = vld [vmem:[#allocation3] sm:$0x3]
    %v1192 = vpack.c.bf16 %v1190, %v1190
    %s1193 = scalar_lea.vmem [#allocation4], 10
    %v1194 = vld [vmem:[%s1193] sm:$0x3]
    %v1196 = vsel %vm99, %v1192, 0
    %1198 = vmatprep.subr.bf16.mxu0 0
    %1199 = vmatpush1.bf16.msra.mxu0 %v95
    %1200 = vmatprep.subr.bf16.mxu0 0
    %1201 = vmatpush1.bf16.msra.mxu0 %v96
    %1202 = vmatprep.subr.bf16.mxu0 0
    %1203 = vmatpush1.bf16.msra.mxu0 0
    %1204 = vmatprep.subr.bf16.mxu0 0
    %1205 = vmatpush1.bf16.msra.mxu0 0
    %1206 = vmatprep.subr.bf16.mxu0 0
    %1207 = vmatpush1.bf16.msra.mxu0 0
    %1208 = vmatprep.subr.bf16.mxu0 0
    %1209 = vmatpush1.bf16.msra.mxu0 0
    %1210 = vmatprep.subr.bf16.mxu0 0
    %1211 = vmatpush1.bf16.msra.mxu0 0
    %1212 = vmatprep.subr.bf16.mxu0 0
    %1213 = vmatpush1.bf16.msra.mxu0 0
    %1214 = vmatprep.subr.bf16.mxu0 0
    %1215 = vmatpush1.bf16.msra.mxu0 0
    %1216 = vmatprep.subr.bf16.mxu0 0
    %1217 = vmatpush1.bf16.msra.mxu0 0
    %1218 = vmatprep.subr.bf16.mxu0 0
    %1219 = vmatpush1.bf16.msra.mxu0 0
    %1220 = vmatprep.subr.bf16.mxu0 0
    %1221 = vmatpush1.bf16.msra.mxu0 0
    %1222 = vmatprep.subr.bf16.mxu0 0
    %1223 = vmatpush1.bf16.msra.mxu0 0
    %1224 = vmatprep.subr.bf16.mxu0 0
    %1225 = vmatpush1.bf16.msra.mxu0 0
    %1226 = vmatprep.subr.bf16.mxu0 0
    %1227 = vmatpush1.bf16.msra.mxu0 0
    %1228 = vmatprep.subr.bf16.mxu0 0
    %1229 = vmatpush1.bf16.msra.mxu0 0
    %1230 = vmatprep.mubr.bf16.mxu0 0
    %1231 = vmatmul.mubr.bf16.gmra.mrb[0].mxu0 %v1196
    %v1232 = vpop.f32.mrb[0].mxu0
    %v1233 = vadd.f32 0.0, %v1232
    %v1234 = vpop.f32.mrb[0].mxu0
    %v1235 = vpop.f32.mrb[0].mxu0
    %v1236 = vpop.f32.mrb[0].mxu0
    %1237 = vdwg.mxu0
    %v1238 = vadd.f32 %v1194, %v1233
    %s1239 = scalar_lea.vmem [#allocation4], 26
    %v1240 = vld [vmem:[%s1239] sm:$0x3]
    %1241 = vmatprep.subr.bf16.mxu0 0
    %1242 = vmatpush1.bf16.msra.mxu0 %v154
    %1243 = vmatprep.subr.bf16.mxu0 0
    %1244 = vmatpush1.bf16.msra.mxu0 %v155
    %1245 = vmatprep.subr.bf16.mxu0 0
    %1246 = vmatpush1.bf16.msra.mxu0 0
    %1247 = vmatprep.subr.bf16.mxu0 0
    %1248 = vmatpush1.bf16.msra.mxu0 0
    %1249 = vmatprep.subr.bf16.mxu0 0
    %1250 = vmatpush1.bf16.msra.mxu0 0
    %1251 = vmatprep.subr.bf16.mxu0 0
    %1252 = vmatpush1.bf16.msra.mxu0 0
    %1253 = vmatprep.subr.bf16.mxu0 0
    %1254 = vmatpush1.bf16.msra.mxu0 0
    %1255 = vmatprep.subr.bf16.mxu0 0
    %1256 = vmatpush1.bf16.msra.mxu0 0
    %1257 = vmatprep.subr.bf16.mxu0 0
    %1258 = vmatpush1.bf16.msra.mxu0 0
    %1259 = vmatprep.subr.bf16.mxu0 0
    %1260 = vmatpush1.bf16.msra.mxu0 0
    %1261 = vmatprep.subr.bf16.mxu0 0
    %1262 = vmatpush1.bf16.msra.mxu0 0
    %1263 = vmatprep.subr.bf16.mxu0 0
    %1264 = vmatpush1.bf16.msra.mxu0 0
    %1265 = vmatprep.subr.bf16.mxu0 0
    %1266 = vmatpush1.bf16.msra.mxu0 0
    %1267 = vmatprep.subr.bf16.mxu0 0
    %1268 = vmatpush1.bf16.msra.mxu0 0
    %1269 = vmatprep.subr.bf16.mxu0 0
    %1270 = vmatpush1.bf16.msra.mxu0 0
    %1271 = vmatprep.subr.bf16.mxu0 0
    %1272 = vmatpush1.bf16.msra.mxu0 0
    %1273 = vmatprep.mubr.bf16.mxu0 0
    %1274 = vmatmul.mubr.bf16.gmra.mrb[0].mxu0 %v1196
    %v1275 = vpop.f32.mrb[0].mxu0
    %v1276 = vadd.f32 0.0, %v1275
    %v1277 = vpop.f32.mrb[0].mxu0
    %v1278 = vpop.f32.mrb[0].mxu0
    %v1279 = vpop.f32.mrb[0].mxu0
    %1280 = vdwg.mxu0
    %v1281 = vadd.f32 %v1240, %v1276
    %s1282 = scalar_lea.vmem [#allocation4], 42
    %v1283 = vld [vmem:[%s1282] sm:$0x3]
    %1284 = vmatprep.subr.bf16.mxu0 0
    %1285 = vmatpush1.bf16.msra.mxu0 %v209
    %1286 = vmatprep.subr.bf16.mxu0 0
    %1287 = vmatpush1.bf16.msra.mxu0 %v210
    %1288 = vmatprep.subr.bf16.mxu0 0
    %1289 = vmatpush1.bf16.msra.mxu0 0
    %1290 = vmatprep.subr.bf16.mxu0 0
    %1291 = vmatpush1.bf16.msra.mxu0 0
    %1292 = vmatprep.subr.bf16.mxu0 0
    %1293 = vmatpush1.bf16.msra.mxu0 0
    %1294 = vmatprep.subr.bf16.mxu0 0
    %1295 = vmatpush1.bf16.msra.mxu0 0
    %1296 = vmatprep.subr.bf16.mxu0 0
    %1297 = vmatpush1.bf16.msra.mxu0 0
    %1298 = vmatprep.subr.bf16.mxu0 0
    %1299 = vmatpush1.bf16.msra.mxu0 0
    %1300 = vmatprep.subr.bf16.mxu0 0
    %1301 = vmatpush1.bf16.msra.mxu0 0
    %1302 = vmatprep.subr.bf16.mxu0 0
    %1303 = vmatpush1.bf16.msra.mxu0 0
    %1304 = vmatprep.subr.bf16.mxu0 0
    %1305 = vmatpush1.bf16.msra.mxu0 0
    %1306 = vmatprep.subr.bf16.mxu0 0
    %1307 = vmatpush1.bf16.msra.mxu0 0
    %1308 = vmatprep.subr.bf16.mxu0 0
    %1309 = vmatpush1.bf16.msra.mxu0 0
    %1310 = vmatprep.subr.bf16.mxu0 0
    %1311 = vmatpush1.bf16.msra.mxu0 0
    %1312 = vmatprep.subr.bf16.mxu0 0
    %1313 = vmatpush1.bf16.msra.mxu0 0
    %1314 = vmatprep.subr.bf16.mxu0 0
    %1315 = vmatpush1.bf16.msra.mxu0 0
    %1316 = vmatprep.mubr.bf16.mxu0 0
    %1317 = vmatmul.mubr.bf16.gmra.mrb[0].mxu0 %v1196
    %v1318 = vpop.f32.mrb[0].mxu0
    %v1319 = vadd.f32 0.0, %v1318
    %v1320 = vpop.f32.mrb[0].mxu0
    %v1321 = vpop.f32.mrb[0].mxu0
    %v1322 = vpop.f32.mrb[0].mxu0
    %1323 = vdwg.mxu0
    %v1324 = vadd.f32 %v1283, %v1319
    %s1325 = scalar_lea.vmem [#allocation4], 58
    %v1326 = vld [vmem:[%s1325] sm:$0x3]
    %1327 = vmatprep.subr.bf16.mxu0 0
    %1328 = vmatpush1.bf16.msra.mxu0 %v264
    %1329 = vmatprep.subr.bf16.mxu0 0
    %1330 = vmatpush1.bf16.msra.mxu0 %v265
    %1331 = vmatprep.subr.bf16.mxu0 0
    %1332 = vmatpush1.bf16.msra.mxu0 0
    %1333 = vmatprep.subr.bf16.mxu0 0
    %1334 = vmatpush1.bf16.msra.mxu0 0
    %1335 = vmatprep.subr.bf16.mxu0 0
    %1336 = vmatpush1.bf16.msra.mxu0 0
    %1337 = vmatprep.subr.bf16.mxu0 0
    %1338 = vmatpush1.bf16.msra.mxu0 0
    %1339 = vmatprep.subr.bf16.mxu0 0
    %1340 = vmatpush1.bf16.msra.mxu0 0
    %1341 = vmatprep.subr.bf16.mxu0 0
    %1342 = vmatpush1.bf16.msra.mxu0 0
    %1343 = vmatprep.subr.bf16.mxu0 0
    %1344 = vmatpush1.bf16.msra.mxu0 0
    %1345 = vmatprep.subr.bf16.mxu0 0
    %1346 = vmatpush1.bf16.msra.mxu0 0
    %1347 = vmatprep.subr.bf16.mxu0 0
    %1348 = vmatpush1.bf16.msra.mxu0 0
    %1349 = vmatprep.subr.bf16.mxu0 0
    %1350 = vmatpush1.bf16.msra.mxu0 0
    %1351 = vmatprep.subr.bf16.mxu0 0
    %1352 = vmatpush1.bf16.msra.mxu0 0
    %1353 = vmatprep.subr.bf16.mxu0 0
    %1354 = vmatpush1.bf16.msra.mxu0 0
    %1355 = vmatprep.subr.bf16.mxu0 0
    %1356 = vmatpush1.bf16.msra.mxu0 0
    %1357 = vmatprep.subr.bf16.mxu0 0
    %1358 = vmatpush1.bf16.msra.mxu0 0
    %1359 = vmatprep.mubr.bf16.mxu0 0
    %1360 = vmatmul.mubr.bf16.gmra.mrb[0].mxu0 %v1196
    %v1361 = vpop.f32.mrb[0].mxu0
    %v1362 = vadd.f32 0.0, %v1361
    %v1363 = vpop.f32.mrb[0].mxu0
    %v1364 = vpop.f32.mrb[0].mxu0
    %v1365 = vpop.f32.mrb[0].mxu0
    %1366 = vdwg.mxu0
    %v1367 = vadd.f32 %v1326, %v1362
    %v1368 = vxor.u32 %v1238, 2147483648
    %v1369 = vmul.f32 %v1368, 1.442695
    %v1370 = vpow.pop %v1369
    %v1371 = vadd.f32 %v1370, 1.0
    %v1372 = vrcp.pop %v1371
    %v1373 = vmul.f32 1.0, %v1372
    %v1374 = vxor.u32 %v1281, 2147483648
    %v1375 = vmul.f32 %v1374, 1.442695
    %v1376 = vpow.pop %v1375
    %v1377 = vadd.f32 %v1376, 1.0
    %v1378 = vrcp.pop %v1377
    %v1379 = vmul.f32 1.0, %v1378
    %v1380 = vtanh.pop %v1324
    %v1381 = vxor.u32 %v1367, 2147483648
    %v1382 = vmul.f32 %v1381, 1.442695
    %v1383 = vpow.pop %v1382
    %v1384 = vadd.f32 %v1383, 1.0
    %v1385 = vrcp.pop %v1384
    %v1386 = vmul.f32 1.0, %v1385
    %v1387 = vmul.f32 %v1379, %v1191
    %v1388 = vmul.f32 %v1373, %v1380
    %v1389 = vadd.f32 %v1387, %v1388
    %v1390 = vtanh.pop %v1389
    %v1391 = vmul.f32 %v1386, %v1390
    %s1392 = scalar_lea.vmem [#allocation7], 10
    %v1393 = vld [vmem:[%s1392] sm:$0x3]
    %vm1394 = vcmp.gt.f32.partialorder %v1393, 0.0
    %v1395 = vsel %vm1394, %v1389, %v1191
    %1396 = vst.msk [vmem:[#allocation3] sm:$0x3] %vm336, %v1395
    %v1397 = vsel %vm1394, %v1391, %v1190
    %1398 = vst.msk [vmem:[#allocation2] sm:$0x3] %vm336, %v1397
    %v1399 = vsel %vm1394, %v1391, 0.0
    %s1400 = scalar_lea.vmem [#allocation10], 10
    %1401 = vst.msk [vmem:[%s1400] sm:$0x3] %vm336, %v1399
    %v1402 = vld [vmem:[#allocation2] sm:$0x3]
    %v1403 = vld [vmem:[#allocation3] sm:$0x3]
    %v1404 = vpack.c.bf16 %v1402, %v1402
    %s1405 = scalar_lea.vmem [#allocation4], 12
    %v1406 = vld [vmem:[%s1405] sm:$0x3]
    %v1408 = vsel %vm99, %v1404, 0
    %1410 = vmatprep.subr.bf16.mxu0 0
    %1411 = vmatpush1.bf16.msra.mxu0 %v95
    %1412 = vmatprep.subr.bf16.mxu0 0
    %1413 = vmatpush1.bf16.msra.mxu0 %v96
    %1414 = vmatprep.subr.bf16.mxu0 0
    %1415 = vmatpush1.bf16.msra.mxu0 0
    %1416 = vmatprep.subr.bf16.mxu0 0
    %1417 = vmatpush1.bf16.msra.mxu0 0
    %1418 = vmatprep.subr.bf16.mxu0 0
    %1419 = vmatpush1.bf16.msra.mxu0 0
    %1420 = vmatprep.subr.bf16.mxu0 0
    %1421 = vmatpush1.bf16.msra.mxu0 0
    %1422 = vmatprep.subr.bf16.mxu0 0
    %1423 = vmatpush1.bf16.msra.mxu0 0
    %1424 = vmatprep.subr.bf16.mxu0 0
    %1425 = vmatpush1.bf16.msra.mxu0 0
    %1426 = vmatprep.subr.bf16.mxu0 0
    %1427 = vmatpush1.bf16.msra.mxu0 0
    %1428 = vmatprep.subr.bf16.mxu0 0
    %1429 = vmatpush1.bf16.msra.mxu0 0
    %1430 = vmatprep.subr.bf16.mxu0 0
    %1431 = vmatpush1.bf16.msra.mxu0 0
    %1432 = vmatprep.subr.bf16.mxu0 0
    %1433 = vmatpush1.bf16.msra.mxu0 0
    %1434 = vmatprep.subr.bf16.mxu0 0
    %1435 = vmatpush1.bf16.msra.mxu0 0
    %1436 = vmatprep.subr.bf16.mxu0 0
    %1437 = vmatpush1.bf16.msra.mxu0 0
    %1438 = vmatprep.subr.bf16.mxu0 0
    %1439 = vmatpush1.bf16.msra.mxu0 0
    %1440 = vmatprep.subr.bf16.mxu0 0
    %1441 = vmatpush1.bf16.msra.mxu0 0
    %1442 = vmatprep.mubr.bf16.mxu0 0
    %1443 = vmatmul.mubr.bf16.gmra.mrb[0].mxu0 %v1408
    %v1444 = vpop.f32.mrb[0].mxu0
    %v1445 = vadd.f32 0.0, %v1444
    %v1446 = vpop.f32.mrb[0].mxu0
    %v1447 = vpop.f32.mrb[0].mxu0
    %v1448 = vpop.f32.mrb[0].mxu0
    %1449 = vdwg.mxu0
    %v1450 = vadd.f32 %v1406, %v1445
    %s1451 = scalar_lea.vmem [#allocation4], 28
    %v1452 = vld [vmem:[%s1451] sm:$0x3]
    %1453 = vmatprep.subr.bf16.mxu0 0
    %1454 = vmatpush1.bf16.msra.mxu0 %v154
    %1455 = vmatprep.subr.bf16.mxu0 0
    %1456 = vmatpush1.bf16.msra.mxu0 %v155
    %1457 = vmatprep.subr.bf16.mxu0 0
    %1458 = vmatpush1.bf16.msra.mxu0 0
    %1459 = vmatprep.subr.bf16.mxu0 0
    %1460 = vmatpush1.bf16.msra.mxu0 0
    %1461 = vmatprep.subr.bf16.mxu0 0
    %1462 = vmatpush1.bf16.msra.mxu0 0
    %1463 = vmatprep.subr.bf16.mxu0 0
    %1464 = vmatpush1.bf16.msra.mxu0 0
    %1465 = vmatprep.subr.bf16.mxu0 0
    %1466 = vmatpush1.bf16.msra.mxu0 0
    %1467 = vmatprep.subr.bf16.mxu0 0
    %1468 = vmatpush1.bf16.msra.mxu0 0
    %1469 = vmatprep.subr.bf16.mxu0 0
    %1470 = vmatpush1.bf16.msra.mxu0 0
    %1471 = vmatprep.subr.bf16.mxu0 0
    %1472 = vmatpush1.bf16.msra.mxu0 0
    %1473 = vmatprep.subr.bf16.mxu0 0
    %1474 = vmatpush1.bf16.msra.mxu0 0
    %1475 = vmatprep.subr.bf16.mxu0 0
    %1476 = vmatpush1.bf16.msra.mxu0 0
    %1477 = vmatprep.subr.bf16.mxu0 0
    %1478 = vmatpush1.bf16.msra.mxu0 0
    %1479 = vmatprep.subr.bf16.mxu0 0
    %1480 = vmatpush1.bf16.msra.mxu0 0
    %1481 = vmatprep.subr.bf16.mxu0 0
    %1482 = vmatpush1.bf16.msra.mxu0 0
    %1483 = vmatprep.subr.bf16.mxu0 0
    %1484 = vmatpush1.bf16.msra.mxu0 0
    %1485 = vmatprep.mubr.bf16.mxu0 0
    %1486 = vmatmul.mubr.bf16.gmra.mrb[0].mxu0 %v1408
    %v1487 = vpop.f32.mrb[0].mxu0
    %v1488 = vadd.f32 0.0, %v1487
    %v1489 = vpop.f32.mrb[0].mxu0
    %v1490 = vpop.f32.mrb[0].mxu0
    %v1491 = vpop.f32.mrb[0].mxu0
    %1492 = vdwg.mxu0
    %v1493 = vadd.f32 %v1452, %v1488
    %s1494 = scalar_lea.vmem [#allocation4], 44
    %v1495 = vld [vmem:[%s1494] sm:$0x3]
    %1496 = vmatprep.subr.bf16.mxu0 0
    %1497 = vmatpush1.bf16.msra.mxu0 %v209
    %1498 = vmatprep.subr.bf16.mxu0 0
    %1499 = vmatpush1.bf16.msra.mxu0 %v210
    %1500 = vmatprep.subr.bf16.mxu0 0
    %1501 = vmatpush1.bf16.msra.mxu0 0
    %1502 = vmatprep.subr.bf16.mxu0 0
    %1503 = vmatpush1.bf16.msra.mxu0 0
    %1504 = vmatprep.subr.bf16.mxu0 0
    %1505 = vmatpush1.bf16.msra.mxu0 0
    %1506 = vmatprep.subr.bf16.mxu0 0
    %1507 = vmatpush1.bf16.msra.mxu0 0
    %1508 = vmatprep.subr.bf16.mxu0 0
    %1509 = vmatpush1.bf16.msra.mxu0 0
    %1510 = vmatprep.subr.bf16.mxu0 0
    %1511 = vmatpush1.bf16.msra.mxu0 0
    %1512 = vmatprep.subr.bf16.mxu0 0
    %1513 = vmatpush1.bf16.msra.mxu0 0
    %1514 = vmatprep.subr.bf16.mxu0 0
    %1515 = vmatpush1.bf16.msra.mxu0 0
    %1516 = vmatprep.subr.bf16.mxu0 0
    %1517 = vmatpush1.bf16.msra.mxu0 0
    %1518 = vmatprep.subr.bf16.mxu0 0
    %1519 = vmatpush1.bf16.msra.mxu0 0
    %1520 = vmatprep.subr.bf16.mxu0 0
    %1521 = vmatpush1.bf16.msra.mxu0 0
    %1522 = vmatprep.subr.bf16.mxu0 0
    %1523 = vmatpush1.bf16.msra.mxu0 0
    %1524 = vmatprep.subr.bf16.mxu0 0
    %1525 = vmatpush1.bf16.msra.mxu0 0
    %1526 = vmatprep.subr.bf16.mxu0 0
    %1527 = vmatpush1.bf16.msra.mxu0 0
    %1528 = vmatprep.mubr.bf16.mxu0 0
    %1529 = vmatmul.mubr.bf16.gmra.mrb[0].mxu0 %v1408
    %v1530 = vpop.f32.mrb[0].mxu0
    %v1531 = vadd.f32 0.0, %v1530
    %v1532 = vpop.f32.mrb[0].mxu0
    %v1533 = vpop.f32.mrb[0].mxu0
    %v1534 = vpop.f32.mrb[0].mxu0
    %1535 = vdwg.mxu0
    %v1536 = vadd.f32 %v1495, %v1531
    %s1537 = scalar_lea.vmem [#allocation4], 60
    %v1538 = vld [vmem:[%s1537] sm:$0x3]
    %1539 = vmatprep.subr.bf16.mxu0 0
    %1540 = vmatpush1.bf16.msra.mxu0 %v264
    %1541 = vmatprep.subr.bf16.mxu0 0
    %1542 = vmatpush1.bf16.msra.mxu0 %v265
    %1543 = vmatprep.subr.bf16.mxu0 0
    %1544 = vmatpush1.bf16.msra.mxu0 0
    %1545 = vmatprep.subr.bf16.mxu0 0
    %1546 = vmatpush1.bf16.msra.mxu0 0
    %1547 = vmatprep.subr.bf16.mxu0 0
    %1548 = vmatpush1.bf16.msra.mxu0 0
    %1549 = vmatprep.subr.bf16.mxu0 0
    %1550 = vmatpush1.bf16.msra.mxu0 0
    %1551 = vmatprep.subr.bf16.mxu0 0
    %1552 = vmatpush1.bf16.msra.mxu0 0
    %1553 = vmatprep.subr.bf16.mxu0 0
    %1554 = vmatpush1.bf16.msra.mxu0 0
    %1555 = vmatprep.subr.bf16.mxu0 0
    %1556 = vmatpush1.bf16.msra.mxu0 0
    %1557 = vmatprep.subr.bf16.mxu0 0
    %1558 = vmatpush1.bf16.msra.mxu0 0
    %1559 = vmatprep.subr.bf16.mxu0 0
    %1560 = vmatpush1.bf16.msra.mxu0 0
    %1561 = vmatprep.subr.bf16.mxu0 0
    %1562 = vmatpush1.bf16.msra.mxu0 0
    %1563 = vmatprep.subr.bf16.mxu0 0
    %1564 = vmatpush1.bf16.msra.mxu0 0
    %1565 = vmatprep.subr.bf16.mxu0 0
    %1566 = vmatpush1.bf16.msra.mxu0 0
    %1567 = vmatprep.subr.bf16.mxu0 0
    %1568 = vmatpush1.bf16.msra.mxu0 0
    %1569 = vmatprep.subr.bf16.mxu0 0
    %1570 = vmatpush1.bf16.msra.mxu0 0
    %1571 = vmatprep.mubr.bf16.mxu0 0
    %1572 = vmatmul.mubr.bf16.gmra.mrb[0].mxu0 %v1408
    %v1573 = vpop.f32.mrb[0].mxu0
    %v1574 = vadd.f32 0.0, %v1573
    %v1575 = vpop.f32.mrb[0].mxu0
    %v1576 = vpop.f32.mrb[0].mxu0
    %v1577 = vpop.f32.mrb[0].mxu0
    %1578 = vdwg.mxu0
    %v1579 = vadd.f32 %v1538, %v1574
    %v1580 = vxor.u32 %v1450, 2147483648
    %v1581 = vmul.f32 %v1580, 1.442695
    %v1582 = vpow.pop %v1581
    %v1583 = vadd.f32 %v1582, 1.0
    %v1584 = vrcp.pop %v1583
    %v1585 = vmul.f32 1.0, %v1584
    %v1586 = vxor.u32 %v1493, 2147483648
    %v1587 = vmul.f32 %v1586, 1.442695
    %v1588 = vpow.pop %v1587
    %v1589 = vadd.f32 %v1588, 1.0
    %v1590 = vrcp.pop %v1589
    %v1591 = vmul.f32 1.0, %v1590
    %v1592 = vtanh.pop %v1536
    %v1593 = vxor.u32 %v1579, 2147483648
    %v1594 = vmul.f32 %v1593, 1.442695
    %v1595 = vpow.pop %v1594
    %v1596 = vadd.f32 %v1595, 1.0
    %v1597 = vrcp.pop %v1596
    %v1598 = vmul.f32 1.0, %v1597
    %v1599 = vmul.f32 %v1591, %v1403
    %v1600 = vmul.f32 %v1585, %v1592
    %v1601 = vadd.f32 %v1599, %v1600
    %v1602 = vtanh.pop %v1601
    %v1603 = vmul.f32 %v1598, %v1602
    %s1604 = scalar_lea.vmem [#allocation7], 12
    %v1605 = vld [vmem:[%s1604] sm:$0x3]
    %vm1606 = vcmp.gt.f32.partialorder %v1605, 0.0
    %v1607 = vsel %vm1606, %v1601, %v1403
    %1608 = vst.msk [vmem:[#allocation3] sm:$0x3] %vm336, %v1607
    %v1609 = vsel %vm1606, %v1603, %v1402
    %1610 = vst.msk [vmem:[#allocation2] sm:$0x3] %vm336, %v1609
    %v1611 = vsel %vm1606, %v1603, 0.0
    %s1612 = scalar_lea.vmem [#allocation10], 12
    %1613 = vst.msk [vmem:[%s1612] sm:$0x3] %vm336, %v1611
    %v1614 = vld [vmem:[#allocation2] sm:$0x3]
    %v1615 = vld [vmem:[#allocation3] sm:$0x3]
    %v1616 = vpack.c.bf16 %v1614, %v1614
    %s1617 = scalar_lea.vmem [#allocation4], 14
    %v1618 = vld [vmem:[%s1617] sm:$0x3]
    %v1620 = vsel %vm99, %v1616, 0
    %1622 = vmatprep.subr.bf16.mxu0 0
    %1623 = vmatpush1.bf16.msra.mxu0 %v95
    %1624 = vmatprep.subr.bf16.mxu0 0
    %1625 = vmatpush1.bf16.msra.mxu0 %v96
    %1626 = vmatprep.subr.bf16.mxu0 0
    %1627 = vmatpush1.bf16.msra.mxu0 0
    %1628 = vmatprep.subr.bf16.mxu0 0
    %1629 = vmatpush1.bf16.msra.mxu0 0
    %1630 = vmatprep.subr.bf16.mxu0 0
    %1631 = vmatpush1.bf16.msra.mxu0 0
    %1632 = vmatprep.subr.bf16.mxu0 0
    %1633 = vmatpush1.bf16.msra.mxu0 0
    %1634 = vmatprep.subr.bf16.mxu0 0
    %1635 = vmatpush1.bf16.msra.mxu0 0
    %1636 = vmatprep.subr.bf16.mxu0 0
    %1637 = vmatpush1.bf16.msra.mxu0 0
    %1638 = vmatprep.subr.bf16.mxu0 0
    %1639 = vmatpush1.bf16.msra.mxu0 0
    %1640 = vmatprep.subr.bf16.mxu0 0
    %1641 = vmatpush1.bf16.msra.mxu0 0
    %1642 = vmatprep.subr.bf16.mxu0 0
    %1643 = vmatpush1.bf16.msra.mxu0 0
    %1644 = vmatprep.subr.bf16.mxu0 0
    %1645 = vmatpush1.bf16.msra.mxu0 0
    %1646 = vmatprep.subr.bf16.mxu0 0
    %1647 = vmatpush1.bf16.msra.mxu0 0
    %1648 = vmatprep.subr.bf16.mxu0 0
    %1649 = vmatpush1.bf16.msra.mxu0 0
    %1650 = vmatprep.subr.bf16.mxu0 0
    %1651 = vmatpush1.bf16.msra.mxu0 0
    %1652 = vmatprep.subr.bf16.mxu0 0
    %1653 = vmatpush1.bf16.msra.mxu0 0
    %1654 = vmatprep.mubr.bf16.mxu0 0
    %1655 = vmatmul.mubr.bf16.gmra.mrb[0].mxu0 %v1620
    %v1656 = vpop.f32.mrb[0].mxu0
    %v1657 = vadd.f32 0.0, %v1656
    %v1658 = vpop.f32.mrb[0].mxu0
    %v1659 = vpop.f32.mrb[0].mxu0
    %v1660 = vpop.f32.mrb[0].mxu0
    %1661 = vdwg.mxu0
    %v1662 = vadd.f32 %v1618, %v1657
    %s1663 = scalar_lea.vmem [#allocation4], 30
    %v1664 = vld [vmem:[%s1663] sm:$0x3]
    %1665 = vmatprep.subr.bf16.mxu0 0
    %1666 = vmatpush1.bf16.msra.mxu0 %v154
    %1667 = vmatprep.subr.bf16.mxu0 0
    %1668 = vmatpush1.bf16.msra.mxu0 %v155
    %1669 = vmatprep.subr.bf16.mxu0 0
    %1670 = vmatpush1.bf16.msra.mxu0 0
    %1671 = vmatprep.subr.bf16.mxu0 0
    %1672 = vmatpush1.bf16.msra.mxu0 0
    %1673 = vmatprep.subr.bf16.mxu0 0
    %1674 = vmatpush1.bf16.msra.mxu0 0
    %1675 = vmatprep.subr.bf16.mxu0 0
    %1676 = vmatpush1.bf16.msra.mxu0 0
    %1677 = vmatprep.subr.bf16.mxu0 0
    %1678 = vmatpush1.bf16.msra.mxu0 0
    %1679 = vmatprep.subr.bf16.mxu0 0
    %1680 = vmatpush1.bf16.msra.mxu0 0
    %1681 = vmatprep.subr.bf16.mxu0 0
    %1682 = vmatpush1.bf16.msra.mxu0 0
    %1683 = vmatprep.subr.bf16.mxu0 0
    %1684 = vmatpush1.bf16.msra.mxu0 0
    %1685 = vmatprep.subr.bf16.mxu0 0
    %1686 = vmatpush1.bf16.msra.mxu0 0
    %1687 = vmatprep.subr.bf16.mxu0 0
    %1688 = vmatpush1.bf16.msra.mxu0 0
    %1689 = vmatprep.subr.bf16.mxu0 0
    %1690 = vmatpush1.bf16.msra.mxu0 0
    %1691 = vmatprep.subr.bf16.mxu0 0
    %1692 = vmatpush1.bf16.msra.mxu0 0
    %1693 = vmatprep.subr.bf16.mxu0 0
    %1694 = vmatpush1.bf16.msra.mxu0 0
    %1695 = vmatprep.subr.bf16.mxu0 0
    %1696 = vmatpush1.bf16.msra.mxu0 0
    %1697 = vmatprep.mubr.bf16.mxu0 0
    %1698 = vmatmul.mubr.bf16.gmra.mrb[0].mxu0 %v1620
    %v1699 = vpop.f32.mrb[0].mxu0
    %v1700 = vadd.f32 0.0, %v1699
    %v1701 = vpop.f32.mrb[0].mxu0
    %v1702 = vpop.f32.mrb[0].mxu0
    %v1703 = vpop.f32.mrb[0].mxu0
    %1704 = vdwg.mxu0
    %v1705 = vadd.f32 %v1664, %v1700
    %s1706 = scalar_lea.vmem [#allocation4], 46
    %v1707 = vld [vmem:[%s1706] sm:$0x3]
    %1708 = vmatprep.subr.bf16.mxu0 0
    %1709 = vmatpush1.bf16.msra.mxu0 %v209
    %1710 = vmatprep.subr.bf16.mxu0 0
    %1711 = vmatpush1.bf16.msra.mxu0 %v210
    %1712 = vmatprep.subr.bf16.mxu0 0
    %1713 = vmatpush1.bf16.msra.mxu0 0
    %1714 = vmatprep.subr.bf16.mxu0 0
    %1715 = vmatpush1.bf16.msra.mxu0 0
    %1716 = vmatprep.subr.bf16.mxu0 0
    %1717 = vmatpush1.bf16.msra.mxu0 0
    %1718 = vmatprep.subr.bf16.mxu0 0
    %1719 = vmatpush1.bf16.msra.mxu0 0
    %1720 = vmatprep.subr.bf16.mxu0 0
    %1721 = vmatpush1.bf16.msra.mxu0 0
    %1722 = vmatprep.subr.bf16.mxu0 0
    %1723 = vmatpush1.bf16.msra.mxu0 0
    %1724 = vmatprep.subr.bf16.mxu0 0
    %1725 = vmatpush1.bf16.msra.mxu0 0
    %1726 = vmatprep.subr.bf16.mxu0 0
    %1727 = vmatpush1.bf16.msra.mxu0 0
    %1728 = vmatprep.subr.bf16.mxu0 0
    %1729 = vmatpush1.bf16.msra.mxu0 0
    %1730 = vmatprep.subr.bf16.mxu0 0
    %1731 = vmatpush1.bf16.msra.mxu0 0
    %1732 = vmatprep.subr.bf16.mxu0 0
    %1733 = vmatpush1.bf16.msra.mxu0 0
    %1734 = vmatprep.subr.bf16.mxu0 0
    %1735 = vmatpush1.bf16.msra.mxu0 0
    %1736 = vmatprep.subr.bf16.mxu0 0
    %1737 = vmatpush1.bf16.msra.mxu0 0
    %1738 = vmatprep.subr.bf16.mxu0 0
    %1739 = vmatpush1.bf16.msra.mxu0 0
    %1740 = vmatprep.mubr.bf16.mxu0 0
    %1741 = vmatmul.mubr.bf16.gmra.mrb[0].mxu0 %v1620
    %v1742 = vpop.f32.mrb[0].mxu0
    %v1743 = vadd.f32 0.0, %v1742
    %v1744 = vpop.f32.mrb[0].mxu0
    %v1745 = vpop.f32.mrb[0].mxu0
    %v1746 = vpop.f32.mrb[0].mxu0
    %1747 = vdwg.mxu0
    %v1748 = vadd.f32 %v1707, %v1743
    %s1749 = scalar_lea.vmem [#allocation4], 62
    %v1750 = vld [vmem:[%s1749] sm:$0x3]
    %1751 = vmatprep.subr.bf16.mxu0 0
    %1752 = vmatpush1.bf16.msra.mxu0 %v264
    %1753 = vmatprep.subr.bf16.mxu0 0
    %1754 = vmatpush1.bf16.msra.mxu0 %v265
    %1755 = vmatprep.subr.bf16.mxu0 0
    %1756 = vmatpush1.bf16.msra.mxu0 0
    %1757 = vmatprep.subr.bf16.mxu0 0
    %1758 = vmatpush1.bf16.msra.mxu0 0
    %1759 = vmatprep.subr.bf16.mxu0 0
    %1760 = vmatpush1.bf16.msra.mxu0 0
    %1761 = vmatprep.subr.bf16.mxu0 0
    %1762 = vmatpush1.bf16.msra.mxu0 0
    %1763 = vmatprep.subr.bf16.mxu0 0
    %1764 = vmatpush1.bf16.msra.mxu0 0
    %1765 = vmatprep.subr.bf16.mxu0 0
    %1766 = vmatpush1.bf16.msra.mxu0 0
    %1767 = vmatprep.subr.bf16.mxu0 0
    %1768 = vmatpush1.bf16.msra.mxu0 0
    %1769 = vmatprep.subr.bf16.mxu0 0
    %1770 = vmatpush1.bf16.msra.mxu0 0
    %1771 = vmatprep.subr.bf16.mxu0 0
    %1772 = vmatpush1.bf16.msra.mxu0 0
    %1773 = vmatprep.subr.bf16.mxu0 0
    %1774 = vmatpush1.bf16.msra.mxu0 0
    %1775 = vmatprep.subr.bf16.mxu0 0
    %1776 = vmatpush1.bf16.msra.mxu0 0
    %1777 = vmatprep.subr.bf16.mxu0 0
    %1778 = vmatpush1.bf16.msra.mxu0 0
    %1779 = vmatprep.subr.bf16.mxu0 0
    %1780 = vmatpush1.bf16.msra.mxu0 0
    %1781 = vmatprep.subr.bf16.mxu0 0
    %1782 = vmatpush1.bf16.msra.mxu0 0
    %1783 = vmatprep.mubr.bf16.mxu0 0
    %1784 = vmatmul.mubr.bf16.gmra.mrb[0].mxu0 %v1620
    %v1785 = vpop.f32.mrb[0].mxu0
    %v1786 = vadd.f32 0.0, %v1785
    %v1787 = vpop.f32.mrb[0].mxu0
    %v1788 = vpop.f32.mrb[0].mxu0
    %v1789 = vpop.f32.mrb[0].mxu0
    %1790 = vdwg.mxu0
    %v1791 = vadd.f32 %v1750, %v1786
    %v1792 = vxor.u32 %v1662, 2147483648
    %v1793 = vmul.f32 %v1792, 1.442695
    %v1794 = vpow.pop %v1793
    %v1795 = vadd.f32 %v1794, 1.0
    %v1796 = vrcp.pop %v1795
    %v1797 = vmul.f32 1.0, %v1796
    %v1798 = vxor.u32 %v1705, 2147483648
    %v1799 = vmul.f32 %v1798, 1.442695
    %v1800 = vpow.pop %v1799
    %v1801 = vadd.f32 %v1800, 1.0
    %v1802 = vrcp.pop %v1801
    %v1803 = vmul.f32 1.0, %v1802
    %v1804 = vtanh.pop %v1748
    %v1805 = vxor.u32 %v1791, 2147483648
    %v1806 = vmul.f32 %v1805, 1.442695
    %v1807 = vpow.pop %v1806
    %v1808 = vadd.f32 %v1807, 1.0
    %v1809 = vrcp.pop %v1808
    %v1810 = vmul.f32 1.0, %v1809
    %v1811 = vmul.f32 %v1803, %v1615
    %v1812 = vmul.f32 %v1797, %v1804
    %v1813 = vadd.f32 %v1811, %v1812
    %v1814 = vtanh.pop %v1813
    %v1815 = vmul.f32 %v1810, %v1814
    %s1816 = scalar_lea.vmem [#allocation7], 14
    %v1817 = vld [vmem:[%s1816] sm:$0x3]
    %vm1818 = vcmp.gt.f32.partialorder %v1817, 0.0
    %v1819 = vsel %vm1818, %v1813, %v1615
    %1820 = vst.msk [vmem:[#allocation3] sm:$0x3] %vm336, %v1819
    %v1821 = vsel %vm1818, %v1815, %v1614
    %1822 = vst.msk [vmem:[#allocation2] sm:$0x3] %vm336, %v1821
    %v1823 = vsel %vm1818, %v1815, 0.0
    %s1824 = scalar_lea.vmem [#allocation10], 14
    %1825 = vst.msk [vmem:[%s1824] sm:$0x3] %vm336, %v1823
    // Predicated region
    $region30: #{tpu_custom_call.1} parent=1 // pred_check
      _
    $region31: #{tpu_custom_call.1} parent=1 // pred_check_branch
      %1827 = sbr.rel (0) target = $region33
    $region32: #{tpu_custom_call.1} parent=1 // pred_region
      %s1829 = ssub.s32 256, 256
      %1830 = vsyncadd [#allocation6], %s1829
      %s1831 = sshll.u32 [#allocation10], 4
      %s1832 = int_to_ptr.vmem [resolvable:$true] %s1831
      %1837 = dma.vmem_to_hbm [thread:$0]  %s1832, 256, %s3, [#allocation6], 32, 32, 2
    $region33: #{tpu_custom_call.1} parent=1 // pred_fallthru
      _
    // Predicated region
    $region34: #{tpu_custom_call.1} parent=1 // pred_check
      _
    $region35: #{tpu_custom_call.1} parent=1 // pred_check_branch
      %1839 = sbr.rel (0) target = $region37
    $region36: #{tpu_custom_call.1} parent=1 // pred_region
      %1840 = dma.done [#allocation6], 256
    $region37: #{tpu_custom_call.1} parent=1 // pred_fallthru
      _
    %1841 = vsyncpa [#allocation5], 1
    %1842 = vsyncpa [#allocation8], 1
    %1843 = vsyncpa [#allocation6], 1

</llo_original>
